<compile_context>
chip_gen: v5e
topology: v5e:2x2
jax: 0.10.0
libtpu: 0.0.40
codegen_flags: <defaults>
</compile_context>

<pallas_src>
import functools

import jax
import jax.numpy as jnp
from jax import lax
from jax.experimental import pallas as pl
from jax.experimental.pallas import tpu as pltpu

EPS = 1e-5                    # torch.nn.LayerNorm default
MXU_DTYPE = jnp.bfloat16      # MXU-native input dtype; accumulation stays f32


# ------------------------------ VMEM / tiling --------------------------------
@functools.lru_cache(maxsize=None)
def _vmem_limit_bytes():
    """Per-generation scoped-VMEM limit: ~3/4 of physical, capped at 100 MiB."""
    try:
        cap = int(pltpu.get_tpu_info().vmem_capacity_bytes)
    except Exception:
        cap = 0
    if cap <= 0:
        return 48 * 1024 * 1024       # safe on v5e/v6e (128 MiB) and v7x (64 MiB)
    return min((cap * 3) // 4, 100 * 1024 * 1024)


def _cparams(*sem):
    return pltpu.CompilerParams(dimension_semantics=sem,
                                vmem_limit_bytes=_vmem_limit_bytes())


def _tile_rows(dim, target):
    """Sublane-axis tile: power-of-two divisor of `dim` (>=8), else full dim."""
    t = target
    while t >= 8:
        if dim % t == 0:
            return t
        t //= 2
    return dim


def _tile_lanes(dim, target):
    """Lane-axis tile: 128-multiple power-of-two divisor of `dim`, else full."""
    t = target
    while t >= 128:
        if dim % t == 0:
            return t
        t //= 2
    return dim


def _fit_tiles(R, O, K, tm, tn, *, x_bytes, n_w, n_out, out_bytes,
               extra_per_tile=0):
    """Shrink (tm, tn) until the double-buffered working set fits the budget."""
    budget = int(_vmem_limit_bytes() * 0.6)

    def est(tm_, tn_):
        return (2 * tm_ * K * x_bytes            # x tile (double-buffered)
                + 2 * n_w * K * tn_ * 2          # bf16 weight tiles
                + 2 * n_out * tm_ * tn_ * out_bytes
                + 2 * extra_per_tile * tm_ * tn_)

    while est(tm, tn) > budget:
        if tm > 8 and tm % 2 == 0 and R % (tm // 2) == 0:
            tm //= 2
        elif tn > 128 and tn % 2 == 0 and O % (tn // 2) == 0:
            tn //= 2
        else:
            break
    return tm, tn


# ------------------- [LayerNorm ->] multi-output projection ------------------
def _project_kernel(*refs, n_out, apply_ln):
    if apply_ln:
        x_ref, g_ref, b_ref = refs[:3]
        w_refs = refs[3:3 + n_out]
        o_refs = refs[3 + n_out:3 + 2 * n_out]
        x = x_ref[...].astype(jnp.float32)
        mean = jnp.mean(x, axis=-1, keepdims=True)
        var = jnp.mean(jnp.square(x - mean), axis=-1, keepdims=True)
        xn = (x - mean) * lax.rsqrt(var + EPS) * g_ref[...] + b_ref[...]
        xb = xn.astype(MXU_DTYPE)
    else:
        x_ref = refs[0]
        w_refs = refs[1:1 + n_out]
        o_refs = refs[1 + n_out:1 + 2 * n_out]
        xb = x_ref[...].astype(MXU_DTYPE)

    for t in range(n_out):
        o_refs[t][...] = jnp.dot(
            xb, w_refs[t][...], preferred_element_type=jnp.float32
        ).astype(o_refs[t].dtype)


def project(x2d, weights, *, gamma=None, beta=None, out_dtype=MXU_DTYPE,
            tm_t=512, tn_t=512):
    """y_i = LN?(x) @ w_i for all weights, streaming x from HBM once."""
    R, K = x2d.shape
    O = weights[0].shape[1]
    n_out = len(weights)
    apply_ln = gamma is not None
    x_bytes = jnp.dtype(x2d.dtype).itemsize
    out_bytes = jnp.dtype(out_dtype).itemsize
    tm = _tile_rows(R, tm_t)
    tn = _tile_lanes(O, tn_t)
    tm, tn = _fit_tiles(R, O, K, tm, tn, x_bytes=x_bytes, n_w=n_out,
                        n_out=n_out, out_bytes=out_bytes)

    in_specs = [pl.BlockSpec((tm, K), lambda i, j: (i, 0))]
    args = [x2d]
    if apply_ln:
        in_specs += [pl.BlockSpec((1, K), lambda i, j: (0, 0)),
                     pl.BlockSpec((1, K), lambda i, j: (0, 0))]
        args += [gamma.reshape(1, K).astype(jnp.float32),
                 beta.reshape(1, K).astype(jnp.float32)]
    for w in weights:
        in_specs.append(pl.BlockSpec((K, tn), lambda i, j: (0, j)))
        args.append(w.astype(MXU_DTYPE))

    out_shape = tuple(jax.ShapeDtypeStruct((R, O), out_dtype)
                      for _ in range(n_out))
    out_specs = tuple(pl.BlockSpec((tm, tn), lambda i, j: (i, j))
                      for _ in range(n_out))

    kernel = functools.partial(_project_kernel, n_out=n_out, apply_ln=apply_ln)
    outs = pl.pallas_call(
        kernel,
        out_shape=out_shape,
        grid=(R // tm, O // tn),
        in_specs=in_specs,
        out_specs=out_specs,
        compiler_params=_cparams("parallel", "parallel"),
        cost_estimate=pl.CostEstimate(
            flops=2 * R * K * O * n_out + 8 * R * K,
            transcendentals=0,
            bytes_accessed=R * K * x_bytes + n_out * K * O * 2
                           + n_out * R * O * out_bytes),
    )(*args)
    if not isinstance(outs, (list, tuple)):
        outs = (outs,)
    return tuple(outs)


# ------------------- Linear with fused bias / residual epilogue --------------
def _linear_kernel(x_ref, w_ref, *rest, has_bias, has_res):
    idx = 0
    b_ref = rest[idx] if has_bias else None
    idx += int(has_bias)
    r_ref = rest[idx] if has_res else None
    idx += int(has_res)
    o_ref = rest[idx]

    y = jnp.dot(x_ref[...].astype(MXU_DTYPE), w_ref[...],
                preferred_element_type=jnp.float32)
    if has_bias:
        y = y + b_ref[...]
    if has_res:
        y = y + r_ref[...].astype(jnp.float32)
    o_ref[...] = y.astype(o_ref.dtype)


def linear(x2d, w, b=None, residual=None, *, out_dtype=None,
           tm_t=512, tn_t=512):
    """y = x @ w [+ b] [+ residual]; single full-K MXU pass per output tile."""
    R, K = x2d.shape
    O = w.shape[1]
    has_bias = b is not None
    has_res = residual is not None
    out_dtype = out_dtype or x2d.dtype
    x_bytes = jnp.dtype(x2d.dtype).itemsize
    out_bytes = jnp.dtype(out_dtype).itemsize
    res_bytes = jnp.dtype(residual.dtype).itemsize if has_res else 0
    tm = _tile_rows(R, tm_t)
    tn = _tile_lanes(O, tn_t)
    tm, tn = _fit_tiles(R, O, K, tm, tn, x_bytes=x_bytes, n_w=1, n_out=1,
                        out_bytes=out_bytes, extra_per_tile=res_bytes)

    in_specs = [pl.BlockSpec((tm, K), lambda i, j: (i, 0)),
                pl.BlockSpec((K, tn), lambda i, j: (0, j))]
    args = [x2d, w.astype(MXU_DTYPE)]
    if has_bias:
        in_specs.append(pl.BlockSpec((1, tn), lambda i, j: (0, j)))
        args.append(b.reshape(1, O).astype(jnp.float32))
    if has_res:
        in_specs.append(pl.BlockSpec((tm, tn), lambda i, j: (i, j)))
        args.append(residual)

    kernel = functools.partial(_linear_kernel, has_bias=has_bias,
                               has_res=has_res)
    return pl.pallas_call(
        kernel,
        out_shape=jax.ShapeDtypeStruct((R, O), out_dtype),
        grid=(R // tm, O // tn),
        in_specs=in_specs,
        out_specs=pl.BlockSpec((tm, tn), lambda i, j: (i, j)),
        compiler_params=_cparams("parallel", "parallel"),
        cost_estimate=pl.CostEstimate(
            flops=2 * R * K * O, transcendentals=0,
            bytes_accessed=R * K * x_bytes + K * O * 2 + R * O * out_bytes
                           + R * O * res_bytes),
    )(*args)


# --------------------------- LayerNorm + GEGLU fused --------------------------
def _ln_geglu_kernel(x_ref, g_ref, b_ref, wa_ref, wb_ref, ba_ref, bb_ref,
                     o_ref):
    x = x_ref[...].astype(jnp.float32)
    mean = jnp.mean(x, axis=-1, keepdims=True)
    var = jnp.mean(jnp.square(x - mean), axis=-1, keepdims=True)
    xn = (x - mean) * lax.rsqrt(var + EPS) * g_ref[...] + b_ref[...]
    xb = xn.astype(MXU_DTYPE)
    a = jnp.dot(xb, wa_ref[...], preferred_element_type=jnp.float32) + ba_ref[...]
    g = jnp.dot(xb, wb_ref[...], preferred_element_type=jnp.float32) + bb_ref[...]
    # exact erf-based GELU, matching torch.nn.functional.gelu default
    gelu_g = 0.5 * g * (1.0 + lax.erf(g * 0.7071067811865475))
    o_ref[...] = (a * gelu_g).astype(o_ref.dtype)


def ln_geglu(x2d, gamma, beta, wa, wb, ba, bb, *, out_dtype=MXU_DTYPE,
             tm_t=512, tn_t=512):
    """GEGLU(LN(x)) without materializing LN(x) or the 2*inner intermediate."""
    R, K = x2d.shape
    O = wa.shape[1]
    x_bytes = jnp.dtype(x2d.dtype).itemsize
    out_bytes = jnp.dtype(out_dtype).itemsize
    tm = _tile_rows(R, tm_t)
    tn = _tile_lanes(O, tn_t)
    tm, tn = _fit_tiles(R, O, K, tm, tn, x_bytes=x_bytes, n_w=2, n_out=1,
                        out_bytes=out_bytes)
    return pl.pallas_call(
        _ln_geglu_kernel,
        out_shape=jax.ShapeDtypeStruct((R, O), out_dtype),
        grid=(R // tm, O // tn),
        in_specs=[
            pl.BlockSpec((tm, K), lambda i, j: (i, 0)),
            pl.BlockSpec((1, K), lambda i, j: (0, 0)),
            pl.BlockSpec((1, K), lambda i, j: (0, 0)),
            pl.BlockSpec((K, tn), lambda i, j: (0, j)),
            pl.BlockSpec((K, tn), lambda i, j: (0, j)),
            pl.BlockSpec((1, tn), lambda i, j: (0, j)),
            pl.BlockSpec((1, tn), lambda i, j: (0, j)),
        ],
        out_specs=pl.BlockSpec((tm, tn), lambda i, j: (i, j)),
        compiler_params=_cparams("parallel", "parallel"),
        cost_estimate=pl.CostEstimate(
            flops=4 * R * K * O + 8 * R * K, transcendentals=R * O,
            bytes_accessed=R * K * x_bytes + 2 * K * O * 2 + R * O * out_bytes),
    )(x2d, gamma.reshape(1, K).astype(jnp.float32),
      beta.reshape(1, K).astype(jnp.float32),
      wa.astype(MXU_DTYPE), wb.astype(MXU_DTYPE),
      ba.reshape(1, O).astype(jnp.float32), bb.reshape(1, O).astype(jnp.float32))


# ------------------------- Flash-style attention kernel ----------------------
def _attn_kernel(q_ref, k_ref, v_ref, o_ref, m_ref, l_ref, acc_ref,
                 *, heads, dh, nkv):
    kv = pl.program_id(2)

    @pl.when(kv == 0)
    def _():
        m_ref[...] = jnp.full_like(m_ref, -jnp.inf)
        l_ref[...] = jnp.zeros_like(l_ref)
        acc_ref[...] = jnp.zeros_like(acc_ref)

    q = q_ref[0]          # (tq,  heads*dh) bf16; softmax scale folded into wq
    k = k_ref[0]          # (tkv, heads*dh) bf16
    v = v_ref[0]          # (tkv, heads*dh) bf16

    for h in range(heads):                       # static unroll over heads
        sl = slice(h * dh, (h + 1) * dh)
        # contract last dims directly (no k.T -> no XLU transpose)
        s = lax.dot_general(q[:, sl], k[:, sl], (((1,), (1,)), ((), ())),
                            preferred_element_type=jnp.float32)      # (tq,tkv)
        m_prev = m_ref[:, h:h + 1]                                    # (tq,1)
        m_new = jnp.maximum(m_prev, jnp.max(s, axis=-1, keepdims=True))
        alpha = jnp.exp(m_prev - m_new)
        p = jnp.exp(s - m_new)
        l_ref[:, h:h + 1] = alpha * l_ref[:, h:h + 1] + jnp.sum(
            p, axis=-1, keepdims=True)
        pv = lax.dot_general(p.astype(MXU_DTYPE), v[:, sl],
                             (((1,), (0,)), ((), ())),
                             preferred_element_type=jnp.float32)      # (tq,dh)
        acc_ref[:, sl] = alpha * acc_ref[:, sl] + pv
        m_ref[:, h:h + 1] = m_new

    @pl.when(kv == nkv - 1)
    def _():
        for h in range(heads):
            sl = slice(h * dh, (h + 1) * dh)
            acc_ref[:, sl] = acc_ref[:, sl] * pl.reciprocal(
                l_ref[:, h:h + 1], approx=True)
        o_ref[0] = acc_ref[...].astype(o_ref.dtype)   # single lane-dense store


def attention(q, k, v, *, heads, tq_t=256, tkv_t=512):
    """q:(B,N,heads*dh), k/v:(B,M,heads*dh) bf16 -> (B,N,heads*dh) bf16.

    The softmax scale must already be folded into the Q projection weight.
    """
    B, N, inner = q.shape
    M = k.shape[1]
    dh = inner // heads
    tq = _tile_rows(N, tq_t)
    tkv = _tile_rows(M, tkv_t)
    nkv = M // tkv
    kernel = functools.partial(_attn_kernel, heads=heads, dh=dh, nkv=nkv)
    return pl.pallas_call(
        kernel,
        out_shape=jax.ShapeDtypeStruct((B, N, inner), MXU_DTYPE),
        # large parallel axis first so v7x megacore splits it across both TCs
        grid=(N // tq, B, nkv),
        in_specs=[
            pl.BlockSpec((1, tq, inner), lambda qi, b, ki: (b, qi, 0)),
            pl.BlockSpec((1, tkv, inner), lambda qi, b, ki: (b, ki, 0)),
            pl.BlockSpec((1, tkv, inner), lambda qi, b, ki: (b, ki, 0)),
        ],
        out_specs=pl.BlockSpec((1, tq, inner), lambda qi, b, ki: (b, qi, 0)),
        scratch_shapes=[
            pltpu.VMEM((tq, heads), jnp.float32),   # running max m
            pltpu.VMEM((tq, heads), jnp.float32),   # running denom l
            pltpu.VMEM((tq, inner), jnp.float32),   # lane-dense output acc
        ],
        compiler_params=_cparams("parallel", "parallel", "arbitrary"),
        cost_estimate=pl.CostEstimate(
            flops=4 * B * heads * N * M * dh,
            transcendentals=B * heads * N * M,
            bytes_accessed=(2 * B * N * inner + 2 * B * M * inner) * 2),
    )(q, k, v)


# ----------------------------- Module composition ----------------------------
def _fold_scale(wq, heads):
    dh = wq.shape[1] // heads
    return (wq.astype(jnp.float32) * (dh ** -0.5)).astype(MXU_DTYPE)


def cross_attention(x2d, b, n, context, p, heads, norm_g, norm_b, residual):
    """norm(x) -> fused [Q|K|V] proj -> flash attention -> out proj (+bias+res)."""
    wq_s = _fold_scale(p["wq"], heads)
    if context is None:     # self-attention: LN + Q/K/V fused, x read once
        q, k, v = project(x2d, [wq_s, p["wk"], p["wv"]],
                          gamma=norm_g, beta=norm_b)
        m = n
    else:                   # cross-attention: LN + Q fused; K/V fused on context
        (q,) = project(x2d, [wq_s], gamma=norm_g, beta=norm_b)
        bc, m, dc = context.shape
        k, v = project(context.reshape(bc * m, dc), [p["wk"], p["wv"]])
    inner = q.shape[-1]
    a = attention(q.reshape(b, n, inner), k.reshape(b, m, inner),
                  v.reshape(b, m, inner), heads=heads)
    return linear(a.reshape(b * n, inner), p["wo"], p["bo"],
                  residual=residual, out_dtype=jnp.float32)


def basic_transformer_block(x, context, params, heads):
    B, N, D = x.shape
    x2 = x.reshape(B * N, D).astype(jnp.float32)      # f32 residual stream

    # x = attn1(norm1(x)) + x           (self-attention; LN fused into QKV proj)
    x2 = cross_attention(x2, B, N, None, params["attn1"], heads,
                         params["norm1_g"], params["norm1_b"], residual=x2)

    # x = attn2(norm2(x), context) + x  (cross-attention; LN fused into Q proj)
    x2 = cross_attention(x2, B, N, context, params["attn2"], heads,
                         params["norm2_g"], params["norm2_b"], residual=x2)

    # x = ff(norm3(x)) + x              (LN + GEGLU fused; residual fused)
    g = ln_geglu(x2, params["norm3_g"], params["norm3_b"],
                 params["ff"]["w1a"], params["ff"]["w1b"],
                 params["ff"]["b1a"], params["ff"]["b1b"])
    x2 = linear(g, params["ff"]["w2"], params["ff"]["b2"],
                residual=x2, out_dtype=jnp.float32)

    return x2.reshape(B, N, D).astype(x.dtype)


# --------------------------------- Params ------------------------------------
def make_params(key, dim, n_heads, d_head, context_dim, ff_mult=4):
    inner = n_heads * d_head
    ff_inner = int(dim * ff_mult)
    ks = jax.random.split(key, 16)
    s = 0.05

    def w(k, shape):   # matmul weights stored bf16 (MXU-native, half the DMA)
        return (s * jax.random.normal(k, shape)).astype(MXU_DTYPE)

    def b(k, shape):   # biases / LN params stay f32
        return (s * jax.random.normal(k, shape)).astype(jnp.float32)

    return {
        "norm1_g": jnp.ones((dim,), jnp.float32),
        "norm1_b": jnp.zeros((dim,), jnp.float32),
        "norm2_g": jnp.ones((dim,), jnp.float32),
        "norm2_b": jnp.zeros((dim,), jnp.float32),
        "norm3_g": jnp.ones((dim,), jnp.float32),
        "norm3_b": jnp.zeros((dim,), jnp.float32),
        "attn1": {
            "wq": w(ks[0], (dim, inner)),
            "wk": w(ks[1], (dim, inner)),
            "wv": w(ks[2], (dim, inner)),
            "wo": w(ks[3], (inner, dim)),
            "bo": b(ks[4], (dim,)),
        },
        "attn2": {
            "wq": w(ks[5], (dim, inner)),
            "wk": w(ks[6], (context_dim, inner)),
            "wv": w(ks[7], (context_dim, inner)),
            "wo": w(ks[8], (inner, dim)),
            "bo": b(ks[9], (dim,)),
        },
        "ff": {
            # GEGLU proj split into value half (a) and gate half (b)
            "w1a": w(ks[10], (dim, ff_inner)),
            "w1b": w(ks[11], (dim, ff_inner)),
            "b1a": b(ks[12], (ff_inner,)),
            "b1b": b(ks[13], (ff_inner,)),
            "w2": w(ks[14], (ff_inner, dim)),
            "b2": b(ks[15], (dim,)),
        },
    }


# ----------------------------------- Main -------------------------------------
if __name__ == "__main__":
    B, N, dim = 2, 8, 32
    n_heads, d_head = 4, 8
    M, context_dim = 8, 16

    key = jax.random.PRNGKey(0)
    kx, kc, kp = jax.random.split(key, 3)
    x = jax.random.normal(kx, (B, N, dim), dtype=jnp.float32)
    context = jax.random.normal(kc, (B, M, context_dim), dtype=jnp.float32)
    params = make_params(kp, dim, n_heads, d_head, context_dim)

    fwd = jax.jit(lambda xx, cc, pp: basic_transformer_block(xx, cc, pp, n_heads))
    out = fwd(x, context, params)
    out = jax.block_until_ready(out)
    assert out.shape == (B, N, dim)
    print("KERNEL_OK")
</pallas_src>

<mosaic_0001>
module attributes {stable_mosaic.version = 11 : i64} {
  func.func @_project_kernel(%arg0: i32, %arg1: i32, %arg2: memref<16x32xf32, #tpu.memory_space<vmem>>, %arg3: memref<1x32xf32, #tpu.memory_space<vmem>>, %arg4: memref<1x32xf32, #tpu.memory_space<vmem>>, %arg5: memref<32x32xbf16, #tpu.memory_space<vmem>>, %arg6: memref<32x32xbf16, #tpu.memory_space<vmem>>, %arg7: memref<32x32xbf16, #tpu.memory_space<vmem>>, %arg8: memref<16x32xbf16, #tpu.memory_space<vmem>>, %arg9: memref<16x32xbf16, #tpu.memory_space<vmem>>, %arg10: memref<16x32xbf16, #tpu.memory_space<vmem>>) attributes {dimension_semantics = [#tpu.dimension_semantics<parallel>, #tpu.dimension_semantics<parallel>], iteration_bounds = array<i64: 1, 1>, scalar_prefetch = 0 : i64, scratch_operands = 0 : i64, tpu.core_type = #tpu.core_type<tc>, window_params = [{transform_indices = @transform_0, window_bounds = array<i64: 16, 32>}, {pipeline_mode = #tpu.pipeline_mode<synchronous>, transform_indices = @transform_1, window_bounds = array<i64: 1, 32>}, {pipeline_mode = #tpu.pipeline_mode<synchronous>, transform_indices = @transform_2, window_bounds = array<i64: 1, 32>}, {transform_indices = @transform_3, window_bounds = array<i64: 32, 32>}, {transform_indices = @transform_4, window_bounds = array<i64: 32, 32>}, {transform_indices = @transform_5, window_bounds = array<i64: 32, 32>}, {transform_indices = @transform_6, window_bounds = array<i64: 16, 32>}, {transform_indices = @transform_7, window_bounds = array<i64: 16, 32>}, {transform_indices = @transform_8, window_bounds = array<i64: 16, 32>}]} {
    %c0 = arith.constant 0 : index
    %c0_0 = arith.constant 0 : index
    %0 = vector.load %arg2[%c0, %c0_0] : memref<16x32xf32, #tpu.memory_space<vmem>>, vector<16x32xf32>
    %cst = arith.constant dense<0.000000e+00> : vector<16xf32>
    %1 = vector.multi_reduction <add>, %0, %cst [1] : vector<16x32xf32> to vector<16xf32>
    %2 = vector.shape_cast %1 : vector<16xf32> to vector<16x1xf32>
    %cst_1 = arith.constant 3.200000e+01 : f32
    %3 = vector.broadcast %cst_1 : f32 to vector<16x1xf32>
    %4 = arith.divf %2, %3 : vector<16x1xf32>
    %5 = vector.broadcast %4 : vector<16x1xf32> to vector<16x32xf32>
    %6 = arith.subf %0, %5 : vector<16x32xf32>
    %7 = arith.mulf %6, %6 : vector<16x32xf32>
    %cst_2 = arith.constant dense<0.000000e+00> : vector<16xf32>
    %8 = vector.multi_reduction <add>, %7, %cst_2 [1] : vector<16x32xf32> to vector<16xf32>
    %9 = vector.shape_cast %8 : vector<16xf32> to vector<16x1xf32>
    %cst_3 = arith.constant 3.200000e+01 : f32
    %10 = vector.broadcast %cst_3 : f32 to vector<16x1xf32>
    %11 = arith.divf %9, %10 : vector<16x1xf32>
    %12 = vector.broadcast %4 : vector<16x1xf32> to vector<16x32xf32>
    %13 = arith.subf %0, %12 : vector<16x32xf32>
    %cst_4 = arith.constant 9.99999974E-6 : f32
    %14 = vector.broadcast %cst_4 : f32 to vector<16x1xf32>
    %15 = arith.addf %11, %14 : vector<16x1xf32>
    %16 = math.rsqrt %15 : vector<16x1xf32>
    %17 = vector.broadcast %16 : vector<16x1xf32> to vector<16x32xf32>
    %18 = arith.mulf %13, %17 : vector<16x32xf32>
    %c0_5 = arith.constant 0 : index
    %c0_6 = arith.constant 0 : index
    %19 = vector.load %arg3[%c0_5, %c0_6] : memref<1x32xf32, #tpu.memory_space<vmem>>, vector<1x32xf32>
    %20 = vector.broadcast %19 : vector<1x32xf32> to vector<16x32xf32>
    %21 = arith.mulf %18, %20 : vector<16x32xf32>
    %c0_7 = arith.constant 0 : index
    %c0_8 = arith.constant 0 : index
    %22 = vector.load %arg4[%c0_7, %c0_8] : memref<1x32xf32, #tpu.memory_space<vmem>>, vector<1x32xf32>
    %23 = vector.broadcast %22 : vector<1x32xf32> to vector<16x32xf32>
    %24 = arith.addf %21, %23 : vector<16x32xf32>
    %25 = arith.truncf %24 : vector<16x32xf32> to vector<16x32xbf16>
    %c0_9 = arith.constant 0 : index
    %c0_10 = arith.constant 0 : index
    %26 = vector.load %arg5[%c0_9, %c0_10] : memref<32x32xbf16, #tpu.memory_space<vmem>>, vector<32x32xbf16>
    %cst_11 = arith.constant dense<0.000000e+00> : vector<16x32xf32>
    %27 = tpu.matmul %25, %26, %cst_11 {dimension_numbers = #tpu.dot_dimension_numbers<[1], [0], [0], [1], [0, 0, 1, 1], [], []>} : vector<16x32xbf16>, vector<32x32xbf16>, vector<16x32xf32> -> vector<16x32xf32>
    %28 = arith.truncf %27 : vector<16x32xf32> to vector<16x32xbf16>
    %c0_12 = arith.constant 0 : index
    %c0_13 = arith.constant 0 : index
    %29 = vector.load %arg8[%c0_12, %c0_13] : memref<16x32xbf16, #tpu.memory_space<vmem>>, vector<16x32xbf16>
    tpu.vector_store %arg8[%c0_12, %c0_13], %28 {strides = array<i32>} : memref<16x32xbf16, #tpu.memory_space<vmem>>, vector<16x32xbf16>,
    %c0_14 = arith.constant 0 : index
    %c0_15 = arith.constant 0 : index
    %30 = vector.load %arg6[%c0_14, %c0_15] : memref<32x32xbf16, #tpu.memory_space<vmem>>, vector<32x32xbf16>
    %cst_16 = arith.constant dense<0.000000e+00> : vector<16x32xf32>
    %31 = tpu.matmul %25, %30, %cst_16 {dimension_numbers = #tpu.dot_dimension_numbers<[1], [0], [0], [1], [0, 0, 1, 1], [], []>} : vector<16x32xbf16>, vector<32x32xbf16>, vector<16x32xf32> -> vector<16x32xf32>
    %32 = arith.truncf %31 : vector<16x32xf32> to vector<16x32xbf16>
    %c0_17 = arith.constant 0 : index
    %c0_18 = arith.constant 0 : index
    %33 = vector.load %arg9[%c0_17, %c0_18] : memref<16x32xbf16, #tpu.memory_space<vmem>>, vector<16x32xbf16>
    tpu.vector_store %arg9[%c0_17, %c0_18], %32 {strides = array<i32>} : memref<16x32xbf16, #tpu.memory_space<vmem>>, vector<16x32xbf16>,
    %c0_19 = arith.constant 0 : index
    %c0_20 = arith.constant 0 : index
    %34 = vector.load %arg7[%c0_19, %c0_20] : memref<32x32xbf16, #tpu.memory_space<vmem>>, vector<32x32xbf16>
    %cst_21 = arith.constant dense<0.000000e+00> : vector<16x32xf32>
    %35 = tpu.matmul %25, %34, %cst_21 {dimension_numbers = #tpu.dot_dimension_numbers<[1], [0], [0], [1], [0, 0, 1, 1], [], []>} : vector<16x32xbf16>, vector<32x32xbf16>, vector<16x32xf32> -> vector<16x32xf32>
    %36 = arith.truncf %35 : vector<16x32xf32> to vector<16x32xbf16>
    %c0_22 = arith.constant 0 : index
    %c0_23 = arith.constant 0 : index
    %37 = vector.load %arg10[%c0_22, %c0_23] : memref<16x32xbf16, #tpu.memory_space<vmem>>, vector<16x32xbf16>
    tpu.vector_store %arg10[%c0_22, %c0_23], %36 {strides = array<i32>} : memref<16x32xbf16, #tpu.memory_space<vmem>>, vector<16x32xbf16>,
    return
  }
  func.func @transform_0(%arg0: i32, %arg1: i32) -> (i32, i32) {
    %c0_i32 = arith.constant 0 : i32
    %c0_i32_0 = arith.constant 0 : i32
    return %arg0, %c0_i32 : i32, i32
  }
  func.func @transform_1(%arg0: i32, %arg1: i32) -> (i32, i32) {
    %c0_i32 = arith.constant 0 : i32
    %c0_i32_0 = arith.constant 0 : i32
    %c0_i32_1 = arith.constant 0 : i32
    return %c0_i32, %c0_i32_0 : i32, i32
  }
  func.func @transform_2(%arg0: i32, %arg1: i32) -> (i32, i32) {
    %c0_i32 = arith.constant 0 : i32
    %c0_i32_0 = arith.constant 0 : i32
    %c0_i32_1 = arith.constant 0 : i32
    return %c0_i32, %c0_i32_0 : i32, i32
  }
  func.func @transform_3(%arg0: i32, %arg1: i32) -> (i32, i32) {
    %c0_i32 = arith.constant 0 : i32
    %c0_i32_0 = arith.constant 0 : i32
    return %c0_i32, %arg1 : i32, i32
  }
  func.func @transform_4(%arg0: i32, %arg1: i32) -> (i32, i32) {
    %c0_i32 = arith.constant 0 : i32
    %c0_i32_0 = arith.constant 0 : i32
    return %c0_i32, %arg1 : i32, i32
  }
  func.func @transform_5(%arg0: i32, %arg1: i32) -> (i32, i32) {
    %c0_i32 = arith.constant 0 : i32
    %c0_i32_0 = arith.constant 0 : i32
    return %c0_i32, %arg1 : i32, i32
  }
  func.func @transform_6(%arg0: i32, %arg1: i32) -> (i32, i32) {
    %c0_i32 = arith.constant 0 : i32
    return %arg0, %arg1 : i32, i32
  }
  func.func @transform_7(%arg0: i32, %arg1: i32) -> (i32, i32) {
    %c0_i32 = arith.constant 0 : i32
    return %arg0, %arg1 : i32, i32
  }
  func.func @transform_8(%arg0: i32, %arg1: i32) -> (i32, i32) {
    %c0_i32 = arith.constant 0 : i32
    return %arg0, %arg1 : i32, i32
  }
}

module attributes {stable_mosaic.version = 11 : i64} {
  func.func @_linear_kernel(%arg0: i32, %arg1: i32, %arg2: memref<16x32xbf16, #tpu.memory_space<vmem>>, %arg3: memref<32x32xbf16, #tpu.memory_space<vmem>>, %arg4: memref<1x32xf32, #tpu.memory_space<vmem>>, %arg5: memref<16x32xf32, #tpu.memory_space<vmem>>, %arg6: memref<16x32xf32, #tpu.memory_space<vmem>>) attributes {dimension_semantics = [#tpu.dimension_semantics<parallel>, #tpu.dimension_semantics<parallel>], iteration_bounds = array<i64: 1, 1>, scalar_prefetch = 0 : i64, scratch_operands = 0 : i64, tpu.core_type = #tpu.core_type<tc>, window_params = [{transform_indices = @transform_0, window_bounds = array<i64: 16, 32>}, {transform_indices = @transform_1, window_bounds = array<i64: 32, 32>}, {transform_indices = @transform_2, window_bounds = array<i64: 1, 32>}, {transform_indices = @transform_3, window_bounds = array<i64: 16, 32>}, {transform_indices = @transform_4, window_bounds = array<i64: 16, 32>}]} {
    %c0 = arith.constant 0 : index
    %c0_0 = arith.constant 0 : index
    %0 = vector.load %arg2[%c0, %c0_0] : memref<16x32xbf16, #tpu.memory_space<vmem>>, vector<16x32xbf16>
    %c0_1 = arith.constant 0 : index
    %c0_2 = arith.constant 0 : index
    %1 = vector.load %arg3[%c0_1, %c0_2] : memref<32x32xbf16, #tpu.memory_space<vmem>>, vector<32x32xbf16>
    %cst = arith.constant dense<0.000000e+00> : vector<16x32xf32>
    %2 = tpu.matmul %0, %1, %cst {dimension_numbers = #tpu.dot_dimension_numbers<[1], [0], [0], [1], [0, 0, 1, 1], [], []>} : vector<16x32xbf16>, vector<32x32xbf16>, vector<16x32xf32> -> vector<16x32xf32>
    %c0_3 = arith.constant 0 : index
    %c0_4 = arith.constant 0 : index
    %3 = vector.load %arg4[%c0_3, %c0_4] : memref<1x32xf32, #tpu.memory_space<vmem>>, vector<1x32xf32>
    %4 = vector.broadcast %3 : vector<1x32xf32> to vector<16x32xf32>
    %5 = arith.addf %2, %4 : vector<16x32xf32>
    %c0_5 = arith.constant 0 : index
    %c0_6 = arith.constant 0 : index
    %6 = vector.load %arg5[%c0_5, %c0_6] : memref<16x32xf32, #tpu.memory_space<vmem>>, vector<16x32xf32>
    %7 = arith.addf %5, %6 : vector<16x32xf32>
    %c0_7 = arith.constant 0 : index
    %c0_8 = arith.constant 0 : index
    %8 = vector.load %arg6[%c0_7, %c0_8] : memref<16x32xf32, #tpu.memory_space<vmem>>, vector<16x32xf32>
    tpu.vector_store %arg6[%c0_7, %c0_8], %7 {strides = array<i32>} : memref<16x32xf32, #tpu.memory_space<vmem>>, vector<16x32xf32>,
    return
  }
  func.func @transform_0(%arg0: i32, %arg1: i32) -> (i32, i32) {
    %c0_i32 = arith.constant 0 : i32
    %c0_i32_0 = arith.constant 0 : i32
    return %arg0, %c0_i32 : i32, i32
  }
  func.func @transform_1(%arg0: i32, %arg1: i32) -> (i32, i32) {
    %c0_i32 = arith.constant 0 : i32
    %c0_i32_0 = arith.constant 0 : i32
    return %c0_i32, %arg1 : i32, i32
  }
  func.func @transform_2(%arg0: i32, %arg1: i32) -> (i32, i32) {
    %c0_i32 = arith.constant 0 : i32
    %c0_i32_0 = arith.constant 0 : i32
    return %c0_i32, %arg1 : i32, i32
  }
  func.func @transform_3(%arg0: i32, %arg1: i32) -> (i32, i32) {
    %c0_i32 = arith.constant 0 : i32
    return %arg0, %arg1 : i32, i32
  }
  func.func @transform_4(%arg0: i32, %arg1: i32) -> (i32, i32) {
    %c0_i32 = arith.constant 0 : i32
    return %arg0, %arg1 : i32, i32
  }
}

module attributes {stable_mosaic.version = 11 : i64} {
  func.func @_attn_kernel(%arg0: i32, %arg1: i32, %arg2: i32, %arg3: memref<1x8x32xbf16, #tpu.memory_space<vmem>>, %arg4: memref<1x8x32xbf16, #tpu.memory_space<vmem>>, %arg5: memref<1x8x32xbf16, #tpu.memory_space<vmem>>, %arg6: memref<1x8x32xbf16, #tpu.memory_space<vmem>>, %arg7: memref<8x4xf32, #tpu.memory_space<vmem>>, %arg8: memref<8x4xf32, #tpu.memory_space<vmem>>, %arg9: memref<8x32xf32, #tpu.memory_space<vmem>>) attributes {dimension_semantics = [#tpu.dimension_semantics<parallel>, #tpu.dimension_semantics<parallel>, #tpu.dimension_semantics<arbitrary>], iteration_bounds = array<i64: 1, 2, 1>, scalar_prefetch = 0 : i64, scratch_operands = 3 : i64, tpu.core_type = #tpu.core_type<tc>, window_params = [{transform_indices = @transform_0, window_bounds = array<i64: 1, 8, 32>}, {transform_indices = @transform_1, window_bounds = array<i64: 1, 8, 32>}, {transform_indices = @transform_2, window_bounds = array<i64: 1, 8, 32>}, {transform_indices = @transform_3, window_bounds = array<i64: 1, 8, 32>}]} {
    %c0_i32 = arith.constant 0 : i32
    %0 = arith.cmpi eq, %arg2, %c0_i32 : i32
    %1 = arith.extui %0 : i1 to i32
    %c0_i32_0 = arith.constant 0 : i32
    %2 = arith.cmpi ne, %1, %c0_i32_0 : i32
    scf.if %2 {
      %cst_68 = arith.constant 0xFF800000 : f32
      %120 = vector.broadcast %cst_68 : f32 to vector<8x4xf32>
      %c0_69 = arith.constant 0 : index
      %c0_70 = arith.constant 0 : index
      %121 = vector.load %arg7[%c0_69, %c0_70] : memref<8x4xf32, #tpu.memory_space<vmem>>, vector<8x4xf32>
      tpu.vector_store %arg7[%c0_69, %c0_70], %120 {strides = array<i32>} : memref<8x4xf32, #tpu.memory_space<vmem>>, vector<8x4xf32>,
      %cst_71 = arith.constant 0.000000e+00 : f32
      %122 = vector.broadcast %cst_71 : f32 to vector<8x4xf32>
      %c0_72 = arith.constant 0 : index
      %c0_73 = arith.constant 0 : index
      %123 = vector.load %arg8[%c0_72, %c0_73] : memref<8x4xf32, #tpu.memory_space<vmem>>, vector<8x4xf32>
      tpu.vector_store %arg8[%c0_72, %c0_73], %122 {strides = array<i32>} : memref<8x4xf32, #tpu.memory_space<vmem>>, vector<8x4xf32>,
      %cst_74 = arith.constant 0.000000e+00 : f32
      %124 = vector.broadcast %cst_74 : f32 to vector<8x32xf32>
      %c0_75 = arith.constant 0 : index
      %c0_76 = arith.constant 0 : index
      %125 = vector.load %arg9[%c0_75, %c0_76] : memref<8x32xf32, #tpu.memory_space<vmem>>, vector<8x32xf32>
      tpu.vector_store %arg9[%c0_75, %c0_76], %124 {strides = array<i32>} : memref<8x32xf32, #tpu.memory_space<vmem>>, vector<8x32xf32>,
    } else {
    }
    %c0 = arith.constant 0 : index
    %c0_1 = arith.constant 0 : index
    %c0_2 = arith.constant 0 : index
    %3 = vector.load %arg3[%c0, %c0_1, %c0_2] : memref<1x8x32xbf16, #tpu.memory_space<vmem>>, vector<1x8x32xbf16>
    %4 = vector.shape_cast %3 : vector<1x8x32xbf16> to vector<8x32xbf16>
    %c0_3 = arith.constant 0 : index
    %c0_4 = arith.constant 0 : index
    %c0_5 = arith.constant 0 : index
    %5 = vector.load %arg4[%c0_3, %c0_4, %c0_5] : memref<1x8x32xbf16, #tpu.memory_space<vmem>>, vector<1x8x32xbf16>
    %6 = vector.shape_cast %5 : vector<1x8x32xbf16> to vector<8x32xbf16>
    %c0_6 = arith.constant 0 : index
    %c0_7 = arith.constant 0 : index
    %c0_8 = arith.constant 0 : index
    %7 = vector.load %arg5[%c0_6, %c0_7, %c0_8] : memref<1x8x32xbf16, #tpu.memory_space<vmem>>, vector<1x8x32xbf16>
    %8 = vector.shape_cast %7 : vector<1x8x32xbf16> to vector<8x32xbf16>
    %9 = vector.extract_strided_slice %4 {offsets = [0, 0], sizes = [8, 8], strides = [1, 1]} : vector<8x32xbf16> to vector<8x8xbf16>
    %10 = vector.extract_strided_slice %6 {offsets = [0, 0], sizes = [8, 8], strides = [1, 1]} : vector<8x32xbf16> to vector<8x8xbf16>
    %cst = arith.constant dense<0.000000e+00> : vector<8x8xf32>
    %11 = tpu.matmul %9, %10, %cst {dimension_numbers = #tpu.dot_dimension_numbers<[1], [1], [0], [0], [0, 0, 1, 0], [], []>} : vector<8x8xbf16>, vector<8x8xbf16>, vector<8x8xf32> -> vector<8x8xf32>
    %c0_9 = arith.constant 0 : index
    %c0_10 = arith.constant 0 : index
    %12 = vector.load %arg7[%c0_9, %c0_10] : memref<8x4xf32, #tpu.memory_space<vmem>>, vector<8x1xf32>
    %cst_11 = arith.constant dense<0xFF800000> : vector<8xf32>
    %13 = vector.multi_reduction <maximumf>, %11, %cst_11 [1] : vector<8x8xf32> to vector<8xf32>
    %14 = vector.shape_cast %13 : vector<8xf32> to vector<8x1xf32>
    %15 = arith.maximumf %12, %14 : vector<8x1xf32>
    %16 = arith.subf %12, %15 : vector<8x1xf32>
    %17 = math.exp %16 : vector<8x1xf32>
    %18 = vector.broadcast %15 : vector<8x1xf32> to vector<8x8xf32>
    %19 = arith.subf %11, %18 : vector<8x8xf32>
    %20 = math.exp %19 : vector<8x8xf32>
    %c0_12 = arith.constant 0 : index
    %c0_13 = arith.constant 0 : index
    %21 = vector.load %arg8[%c0_12, %c0_13] : memref<8x4xf32, #tpu.memory_space<vmem>>, vector<8x1xf32>
    %22 = arith.mulf %17, %21 : vector<8x1xf32>
    %cst_14 = arith.constant dense<0.000000e+00> : vector<8xf32>
    %23 = vector.multi_reduction <add>, %20, %cst_14 [1] : vector<8x8xf32> to vector<8xf32>
    %24 = vector.shape_cast %23 : vector<8xf32> to vector<8x1xf32>
    %25 = arith.addf %22, %24 : vector<8x1xf32>
    %c0_15 = arith.constant 0 : index
    %c0_16 = arith.constant 0 : index
    %26 = vector.load %arg8[%c0_15, %c0_16] : memref<8x4xf32, #tpu.memory_space<vmem>>, vector<8x1xf32>
    tpu.vector_store %arg8[%c0_15, %c0_16], %25 {strides = array<i32>} : memref<8x4xf32, #tpu.memory_space<vmem>>, vector<8x1xf32>,
    %27 = arith.truncf %20 : vector<8x8xf32> to vector<8x8xbf16>
    %28 = vector.extract_strided_slice %8 {offsets = [0, 0], sizes = [8, 8], strides = [1, 1]} : vector<8x32xbf16> to vector<8x8xbf16>
    %cst_17 = arith.constant dense<0.000000e+00> : vector<8x8xf32>
    %29 = tpu.matmul %27, %28, %cst_17 {dimension_numbers = #tpu.dot_dimension_numbers<[1], [0], [0], [1], [0, 0, 1, 1], [], []>} : vector<8x8xbf16>, vector<8x8xbf16>, vector<8x8xf32> -> vector<8x8xf32>
    %c0_18 = arith.constant 0 : index
    %c0_19 = arith.constant 0 : index
    %30 = vector.load %arg9[%c0_18, %c0_19] : memref<8x32xf32, #tpu.memory_space<vmem>>, vector<8x8xf32>
    %31 = vector.broadcast %17 : vector<8x1xf32> to vector<8x8xf32>
    %32 = arith.mulf %31, %30 : vector<8x8xf32>
    %33 = arith.addf %32, %29 : vector<8x8xf32>
    %c0_20 = arith.constant 0 : index
    %c0_21 = arith.constant 0 : index
    %34 = vector.load %arg9[%c0_20, %c0_21] : memref<8x32xf32, #tpu.memory_space<vmem>>, vector<8x8xf32>
    tpu.vector_store %arg9[%c0_20, %c0_21], %33 {strides = array<i32>} : memref<8x32xf32, #tpu.memory_space<vmem>>, vector<8x8xf32>,
    %c0_22 = arith.constant 0 : index
    %c0_23 = arith.constant 0 : index
    %35 = vector.load %arg7[%c0_22, %c0_23] : memref<8x4xf32, #tpu.memory_space<vmem>>, vector<8x1xf32>
    tpu.vector_store %arg7[%c0_22, %c0_23], %15 {strides = array<i32>} : memref<8x4xf32, #tpu.memory_space<vmem>>, vector<8x1xf32>,
    %36 = vector.extract_strided_slice %4 {offsets = [0, 8], sizes = [8, 8], strides = [1, 1]} : vector<8x32xbf16> to vector<8x8xbf16>
    %37 = vector.extract_strided_slice %6 {offsets = [0, 8], sizes = [8, 8], strides = [1, 1]} : vector<8x32xbf16> to vector<8x8xbf16>
    %cst_24 = arith.constant dense<0.000000e+00> : vector<8x8xf32>
    %38 = tpu.matmul %36, %37, %cst_24 {dimension_numbers = #tpu.dot_dimension_numbers<[1], [1], [0], [0], [0, 0, 1, 0], [], []>} : vector<8x8xbf16>, vector<8x8xbf16>, vector<8x8xf32> -> vector<8x8xf32>
    %c0_25 = arith.constant 0 : index
    %c1 = arith.constant 1 : index
    %39 = vector.load %arg7[%c0_25, %c1] : memref<8x4xf32, #tpu.memory_space<vmem>>, vector<8x1xf32>
    %cst_26 = arith.constant dense<0xFF800000> : vector<8xf32>
    %40 = vector.multi_reduction <maximumf>, %38, %cst_26 [1] : vector<8x8xf32> to vector<8xf32>
    %41 = vector.shape_cast %40 : vector<8xf32> to vector<8x1xf32>
    %42 = arith.maximumf %39, %41 : vector<8x1xf32>
    %43 = arith.subf %39, %42 : vector<8x1xf32>
    %44 = math.exp %43 : vector<8x1xf32>
    %45 = vector.broadcast %42 : vector<8x1xf32> to vector<8x8xf32>
    %46 = arith.subf %38, %45 : vector<8x8xf32>
    %47 = math.exp %46 : vector<8x8xf32>
    %c0_27 = arith.constant 0 : index
    %c1_28 = arith.constant 1 : index
    %48 = vector.load %arg8[%c0_27, %c1_28] : memref<8x4xf32, #tpu.memory_space<vmem>>, vector<8x1xf32>
    %49 = arith.mulf %44, %48 : vector<8x1xf32>
    %cst_29 = arith.constant dense<0.000000e+00> : vector<8xf32>
    %50 = vector.multi_reduction <add>, %47, %cst_29 [1] : vector<8x8xf32> to vector<8xf32>
    %51 = vector.shape_cast %50 : vector<8xf32> to vector<8x1xf32>
    %52 = arith.addf %49, %51 : vector<8x1xf32>
    %c0_30 = arith.constant 0 : index
    %c1_31 = arith.constant 1 : index
    %53 = vector.load %arg8[%c0_30, %c1_31] : memref<8x4xf32, #tpu.memory_space<vmem>>, vector<8x1xf32>
    tpu.vector_store %arg8[%c0_30, %c1_31], %52 {strides = array<i32>} : memref<8x4xf32, #tpu.memory_space<vmem>>, vector<8x1xf32>,
    %54 = arith.truncf %47 : vector<8x8xf32> to vector<8x8xbf16>
    %55 = vector.extract_strided_slice %8 {offsets = [0, 8], sizes = [8, 8], strides = [1, 1]} : vector<8x32xbf16> to vector<8x8xbf16>
    %cst_32 = arith.constant dense<0.000000e+00> : vector<8x8xf32>
    %56 = tpu.matmul %54, %55, %cst_32 {dimension_numbers = #tpu.dot_dimension_numbers<[1], [0], [0], [1], [0, 0, 1, 1], [], []>} : vector<8x8xbf16>, vector<8x8xbf16>, vector<8x8xf32> -> vector<8x8xf32>
    %c0_33 = arith.constant 0 : index
    %c8 = arith.constant 8 : index
    %57 = vector.load %arg9[%c0_33, %c8] : memref<8x32xf32, #tpu.memory_space<vmem>>, vector<8x8xf32>
    %58 = vector.broadcast %44 : vector<8x1xf32> to vector<8x8xf32>
    %59 = arith.mulf %58, %57 : vector<8x8xf32>
    %60 = arith.addf %59, %56 : vector<8x8xf32>
    %c0_34 = arith.constant 0 : index
    %c8_35 = arith.constant 8 : index
    %61 = vector.load %arg9[%c0_34, %c8_35] : memref<8x32xf32, #tpu.memory_space<vmem>>, vector<8x8xf32>
    tpu.vector_store %arg9[%c0_34, %c8_35], %60 {strides = array<i32>} : memref<8x32xf32, #tpu.memory_space<vmem>>, vector<8x8xf32>,
    %c0_36 = arith.constant 0 : index
    %c1_37 = arith.constant 1 : index
    %62 = vector.load %arg7[%c0_36, %c1_37] : memref<8x4xf32, #tpu.memory_space<vmem>>, vector<8x1xf32>
    tpu.vector_store %arg7[%c0_36, %c1_37], %42 {strides = array<i32>} : memref<8x4xf32, #tpu.memory_space<vmem>>, vector<8x1xf32>,
    %63 = vector.extract_strided_slice %4 {offsets = [0, 16], sizes = [8, 8], strides = [1, 1]} : vector<8x32xbf16> to vector<8x8xbf16>
    %64 = vector.extract_strided_slice %6 {offsets = [0, 16], sizes = [8, 8], strides = [1, 1]} : vector<8x32xbf16> to vector<8x8xbf16>
    %cst_38 = arith.constant dense<0.000000e+00> : vector<8x8xf32>
    %65 = tpu.matmul %63, %64, %cst_38 {dimension_numbers = #tpu.dot_dimension_numbers<[1], [1], [0], [0], [0, 0, 1, 0], [], []>} : vector<8x8xbf16>, vector<8x8xbf16>, vector<8x8xf32> -> vector<8x8xf32>
    %c0_39 = arith.constant 0 : index
    %c2 = arith.constant 2 : index
    %66 = vector.load %arg7[%c0_39, %c2] : memref<8x4xf32, #tpu.memory_space<vmem>>, vector<8x1xf32>
    %cst_40 = arith.constant dense<0xFF800000> : vector<8xf32>
    %67 = vector.multi_reduction <maximumf>, %65, %cst_40 [1] : vector<8x8xf32> to vector<8xf32>
    %68 = vector.shape_cast %67 : vector<8xf32> to vector<8x1xf32>
    %69 = arith.maximumf %66, %68 : vector<8x1xf32>
    %70 = arith.subf %66, %69 : vector<8x1xf32>
    %71 = math.exp %70 : vector<8x1xf32>
    %72 = vector.broadcast %69 : vector<8x1xf32> to vector<8x8xf32>
    %73 = arith.subf %65, %72 : vector<8x8xf32>
    %74 = math.exp %73 : vector<8x8xf32>
    %c0_41 = arith.constant 0 : index
    %c2_42 = arith.constant 2 : index
    %75 = vector.load %arg8[%c0_41, %c2_42] : memref<8x4xf32, #tpu.memory_space<vmem>>, vector<8x1xf32>
    %76 = arith.mulf %71, %75 : vector<8x1xf32>
    %cst_43 = arith.constant dense<0.000000e+00> : vector<8xf32>
    %77 = vector.multi_reduction <add>, %74, %cst_43 [1] : vector<8x8xf32> to vector<8xf32>
    %78 = vector.shape_cast %77 : vector<8xf32> to vector<8x1xf32>
    %79 = arith.addf %76, %78 : vector<8x1xf32>
    %c0_44 = arith.constant 0 : index
    %c2_45 = arith.constant 2 : index
    %80 = vector.load %arg8[%c0_44, %c2_45] : memref<8x4xf32, #tpu.memory_space<vmem>>, vector<8x1xf32>
    tpu.vector_store %arg8[%c0_44, %c2_45], %79 {strides = array<i32>} : memref<8x4xf32, #tpu.memory_space<vmem>>, vector<8x1xf32>,
    %81 = arith.truncf %74 : vector<8x8xf32> to vector<8x8xbf16>
    %82 = vector.extract_strided_slice %8 {offsets = [0, 16], sizes = [8, 8], strides = [1, 1]} : vector<8x32xbf16> to vector<8x8xbf16>
    %cst_46 = arith.constant dense<0.000000e+00> : vector<8x8xf32>
    %83 = tpu.matmul %81, %82, %cst_46 {dimension_numbers = #tpu.dot_dimension_numbers<[1], [0], [0], [1], [0, 0, 1, 1], [], []>} : vector<8x8xbf16>, vector<8x8xbf16>, vector<8x8xf32> -> vector<8x8xf32>
    %c0_47 = arith.constant 0 : index
    %c16 = arith.constant 16 : index
    %84 = vector.load %arg9[%c0_47, %c16] : memref<8x32xf32, #tpu.memory_space<vmem>>, vector<8x8xf32>
    %85 = vector.broadcast %71 : vector<8x1xf32> to vector<8x8xf32>
    %86 = arith.mulf %85, %84 : vector<8x8xf32>
    %87 = arith.addf %86, %83 : vector<8x8xf32>
    %c0_48 = arith.constant 0 : index
    %c16_49 = arith.constant 16 : index
    %88 = vector.load %arg9[%c0_48, %c16_49] : memref<8x32xf32, #tpu.memory_space<vmem>>, vector<8x8xf32>
    tpu.vector_store %arg9[%c0_48, %c16_49], %87 {strides = array<i32>} : memref<8x32xf32, #tpu.memory_space<vmem>>, vector<8x8xf32>,
    %c0_50 = arith.constant 0 : index
    %c2_51 = arith.constant 2 : index
    %89 = vector.load %arg7[%c0_50, %c2_51] : memref<8x4xf32, #tpu.memory_space<vmem>>, vector<8x1xf32>
    tpu.vector_store %arg7[%c0_50, %c2_51], %69 {strides = array<i32>} : memref<8x4xf32, #tpu.memory_space<vmem>>, vector<8x1xf32>,
    %90 = vector.extract_strided_slice %4 {offsets = [0, 24], sizes = [8, 8], strides = [1, 1]} : vector<8x32xbf16> to vector<8x8xbf16>
    %91 = vector.extract_strided_slice %6 {offsets = [0, 24], sizes = [8, 8], strides = [1, 1]} : vector<8x32xbf16> to vector<8x8xbf16>
    %cst_52 = arith.constant dense<0.000000e+00> : vector<8x8xf32>
    %92 = tpu.matmul %90, %91, %cst_52 {dimension_numbers = #tpu.dot_dimension_numbers<[1], [1], [0], [0], [0, 0, 1, 0], [], []>} : vector<8x8xbf16>, vector<8x8xbf16>, vector<8x8xf32> -> vector<8x8xf32>
    %c0_53 = arith.constant 0 : index
    %c3 = arith.constant 3 : index
    %93 = vector.load %arg7[%c0_53, %c3] : memref<8x4xf32, #tpu.memory_space<vmem>>, vector<8x1xf32>
    %cst_54 = arith.constant dense<0xFF800000> : vector<8xf32>
    %94 = vector.multi_reduction <maximumf>, %92, %cst_54 [1] : vector<8x8xf32> to vector<8xf32>
    %95 = vector.shape_cast %94 : vector<8xf32> to vector<8x1xf32>
    %96 = arith.maximumf %93, %95 : vector<8x1xf32>
    %97 = arith.subf %93, %96 : vector<8x1xf32>
    %98 = math.exp %97 : vector<8x1xf32>
    %99 = vector.broadcast %96 : vector<8x1xf32> to vector<8x8xf32>
    %100 = arith.subf %92, %99 : vector<8x8xf32>
    %101 = math.exp %100 : vector<8x8xf32>
    %c0_55 = arith.constant 0 : index
    %c3_56 = arith.constant 3 : index
    %102 = vector.load %arg8[%c0_55, %c3_56] : memref<8x4xf32, #tpu.memory_space<vmem>>, vector<8x1xf32>
    %103 = arith.mulf %98, %102 : vector<8x1xf32>
    %cst_57 = arith.constant dense<0.000000e+00> : vector<8xf32>
    %104 = vector.multi_reduction <add>, %101, %cst_57 [1] : vector<8x8xf32> to vector<8xf32>
    %105 = vector.shape_cast %104 : vector<8xf32> to vector<8x1xf32>
    %106 = arith.addf %103, %105 : vector<8x1xf32>
    %c0_58 = arith.constant 0 : index
    %c3_59 = arith.constant 3 : index
    %107 = vector.load %arg8[%c0_58, %c3_59] : memref<8x4xf32, #tpu.memory_space<vmem>>, vector<8x1xf32>
    tpu.vector_store %arg8[%c0_58, %c3_59], %106 {strides = array<i32>} : memref<8x4xf32, #tpu.memory_space<vmem>>, vector<8x1xf32>,
    %108 = arith.truncf %101 : vector<8x8xf32> to vector<8x8xbf16>
    %109 = vector.extract_strided_slice %8 {offsets = [0, 24], sizes = [8, 8], strides = [1, 1]} : vector<8x32xbf16> to vector<8x8xbf16>
    %cst_60 = arith.constant dense<0.000000e+00> : vector<8x8xf32>
    %110 = tpu.matmul %108, %109, %cst_60 {dimension_numbers = #tpu.dot_dimension_numbers<[1], [0], [0], [1], [0, 0, 1, 1], [], []>} : vector<8x8xbf16>, vector<8x8xbf16>, vector<8x8xf32> -> vector<8x8xf32>
    %c0_61 = arith.constant 0 : index
    %c24 = arith.constant 24 : index
    %111 = vector.load %arg9[%c0_61, %c24] : memref<8x32xf32, #tpu.memory_space<vmem>>, vector<8x8xf32>
    %112 = vector.broadcast %98 : vector<8x1xf32> to vector<8x8xf32>
    %113 = arith.mulf %112, %111 : vector<8x8xf32>
    %114 = arith.addf %113, %110 : vector<8x8xf32>
    %c0_62 = arith.constant 0 : index
    %c24_63 = arith.constant 24 : index
    %115 = vector.load %arg9[%c0_62, %c24_63] : memref<8x32xf32, #tpu.memory_space<vmem>>, vector<8x8xf32>
    tpu.vector_store %arg9[%c0_62, %c24_63], %114 {strides = array<i32>} : memref<8x32xf32, #tpu.memory_space<vmem>>, vector<8x8xf32>,
    %c0_64 = arith.constant 0 : index
    %c3_65 = arith.constant 3 : index
    %116 = vector.load %arg7[%c0_64, %c3_65] : memref<8x4xf32, #tpu.memory_space<vmem>>, vector<8x1xf32>
    tpu.vector_store %arg7[%c0_64, %c3_65], %96 {strides = array<i32>} : memref<8x4xf32, #tpu.memory_space<vmem>>, vector<8x1xf32>,
    %c0_i32_66 = arith.constant 0 : i32
    %117 = arith.cmpi eq, %arg2, %c0_i32_66 : i32
    %118 = arith.extui %117 : i1 to i32
    %c0_i32_67 = arith.constant 0 : i32
    %119 = arith.cmpi ne, %118, %c0_i32_67 : i32
    scf.if %119 {
      %c0_68 = arith.constant 0 : index
      %c0_69 = arith.constant 0 : index
      %120 = vector.load %arg9[%c0_68, %c0_69] : memref<8x32xf32, #tpu.memory_space<vmem>>, vector<8x8xf32>
      %c0_70 = arith.constant 0 : index
      %c0_71 = arith.constant 0 : index
      %121 = vector.load %arg8[%c0_70, %c0_71] : memref<8x4xf32, #tpu.memory_space<vmem>>, vector<8x1xf32>
      %122 = tpu.reciprocal %121 {approx = true} : vector<8x1xf32> -> vector<8x1xf32>
      %123 = vector.broadcast %122 : vector<8x1xf32> to vector<8x8xf32>
      %124 = arith.mulf %120, %123 : vector<8x8xf32>
      %c0_72 = arith.constant 0 : index
      %c0_73 = arith.constant 0 : index
      %125 = vector.load %arg9[%c0_72, %c0_73] : memref<8x32xf32, #tpu.memory_space<vmem>>, vector<8x8xf32>
      tpu.vector_store %arg9[%c0_72, %c0_73], %124 {strides = array<i32>} : memref<8x32xf32, #tpu.memory_space<vmem>>, vector<8x8xf32>,
      %c0_74 = arith.constant 0 : index
      %c8_75 = arith.constant 8 : index
      %126 = vector.load %arg9[%c0_74, %c8_75] : memref<8x32xf32, #tpu.memory_space<vmem>>, vector<8x8xf32>
      %c0_76 = arith.constant 0 : index
      %c1_77 = arith.constant 1 : index
      %127 = vector.load %arg8[%c0_76, %c1_77] : memref<8x4xf32, #tpu.memory_space<vmem>>, vector<8x1xf32>
      %128 = tpu.reciprocal %127 {approx = true} : vector<8x1xf32> -> vector<8x1xf32>
      %129 = vector.broadcast %128 : vector<8x1xf32> to vector<8x8xf32>
      %130 = arith.mulf %126, %129 : vector<8x8xf32>
      %c0_78 = arith.constant 0 : index
      %c8_79 = arith.constant 8 : index
      %131 = vector.load %arg9[%c0_78, %c8_79] : memref<8x32xf32, #tpu.memory_space<vmem>>, vector<8x8xf32>
      tpu.vector_store %arg9[%c0_78, %c8_79], %130 {strides = array<i32>} : memref<8x32xf32, #tpu.memory_space<vmem>>, vector<8x8xf32>,
      %c0_80 = arith.constant 0 : index
      %c16_81 = arith.constant 16 : index
      %132 = vector.load %arg9[%c0_80, %c16_81] : memref<8x32xf32, #tpu.memory_space<vmem>>, vector<8x8xf32>
      %c0_82 = arith.constant 0 : index
      %c2_83 = arith.constant 2 : index
      %133 = vector.load %arg8[%c0_82, %c2_83] : memref<8x4xf32, #tpu.memory_space<vmem>>, vector<8x1xf32>
      %134 = tpu.reciprocal %133 {approx = true} : vector<8x1xf32> -> vector<8x1xf32>
      %135 = vector.broadcast %134 : vector<8x1xf32> to vector<8x8xf32>
      %136 = arith.mulf %132, %135 : vector<8x8xf32>
      %c0_84 = arith.constant 0 : index
      %c16_85 = arith.constant 16 : index
      %137 = vector.load %arg9[%c0_84, %c16_85] : memref<8x32xf32, #tpu.memory_space<vmem>>, vector<8x8xf32>
      tpu.vector_store %arg9[%c0_84, %c16_85], %136 {strides = array<i32>} : memref<8x32xf32, #tpu.memory_space<vmem>>, vector<8x8xf32>,
      %c0_86 = arith.constant 0 : index
      %c24_87 = arith.constant 24 : index
      %138 = vector.load %arg9[%c0_86, %c24_87] : memref<8x32xf32, #tpu.memory_space<vmem>>, vector<8x8xf32>
      %c0_88 = arith.constant 0 : index
      %c3_89 = arith.constant 3 : index
      %139 = vector.load %arg8[%c0_88, %c3_89] : memref<8x4xf32, #tpu.memory_space<vmem>>, vector<8x1xf32>
      %140 = tpu.reciprocal %139 {approx = true} : vector<8x1xf32> -> vector<8x1xf32>
      %141 = vector.broadcast %140 : vector<8x1xf32> to vector<8x8xf32>
      %142 = arith.mulf %138, %141 : vector<8x8xf32>
      %c0_90 = arith.constant 0 : index
      %c24_91 = arith.constant 24 : index
      %143 = vector.load %arg9[%c0_90, %c24_91] : memref<8x32xf32, #tpu.memory_space<vmem>>, vector<8x8xf32>
      tpu.vector_store %arg9[%c0_90, %c24_91], %142 {strides = array<i32>} : memref<8x32xf32, #tpu.memory_space<vmem>>, vector<8x8xf32>,
      %c0_92 = arith.constant 0 : index
      %c0_93 = arith.constant 0 : index
      %144 = vector.load %arg9[%c0_92, %c0_93] : memref<8x32xf32, #tpu.memory_space<vmem>>, vector<8x32xf32>
      %145 = arith.truncf %144 : vector<8x32xf32> to vector<8x32xbf16>
      %c0_94 = arith.constant 0 : index
      %c0_95 = arith.constant 0 : index
      %c0_96 = arith.constant 0 : index
      %146 = vector.load %arg6[%c0_94, %c0_95, %c0_96] : memref<1x8x32xbf16, #tpu.memory_space<vmem>>, vector<1x8x32xbf16>
      %147 = vector.shape_cast %146 : vector<1x8x32xbf16> to vector<8x32xbf16>
      %148 = vector.shape_cast %145 : vector<8x32xbf16> to vector<1x8x32xbf16>
      tpu.vector_store %arg6[%c0_94, %c0_95, %c0_96], %148 {strides = array<i32>} : memref<1x8x32xbf16, #tpu.memory_space<vmem>>, vector<1x8x32xbf16>,
    } else {
    }
    return
  }
  func.func @transform_0(%arg0: i32, %arg1: i32, %arg2: i32) -> (i32, i32, i32) {
    %c0_i32 = arith.constant 0 : i32
    %c0_i32_0 = arith.constant 0 : i32
    return %arg1, %arg0, %c0_i32 : i32, i32, i32
  }
  func.func @transform_1(%arg0: i32, %arg1: i32, %arg2: i32) -> (i32, i32, i32) {
    %c0_i32 = arith.constant 0 : i32
    %c0_i32_0 = arith.constant 0 : i32
    return %arg1, %arg2, %c0_i32 : i32, i32, i32
  }
  func.func @transform_2(%arg0: i32, %arg1: i32, %arg2: i32) -> (i32, i32, i32) {
    %c0_i32 = arith.constant 0 : i32
    %c0_i32_0 = arith.constant 0 : i32
    return %arg1, %arg2, %c0_i32 : i32, i32, i32
  }
  func.func @transform_3(%arg0: i32, %arg1: i32, %arg2: i32) -> (i32, i32, i32) {
    %c0_i32 = arith.constant 0 : i32
    %c0_i32_0 = arith.constant 0 : i32
    return %arg1, %arg0, %c0_i32 : i32, i32, i32
  }
}

module attributes {stable_mosaic.version = 11 : i64} {
  func.func @_project_kernel(%arg0: i32, %arg1: i32, %arg2: memref<16x32xf32, #tpu.memory_space<vmem>>, %arg3: memref<1x32xf32, #tpu.memory_space<vmem>>, %arg4: memref<1x32xf32, #tpu.memory_space<vmem>>, %arg5: memref<32x32xbf16, #tpu.memory_space<vmem>>, %arg6: memref<16x32xbf16, #tpu.memory_space<vmem>>) attributes {dimension_semantics = [#tpu.dimension_semantics<parallel>, #tpu.dimension_semantics<parallel>], iteration_bounds = array<i64: 1, 1>, scalar_prefetch = 0 : i64, scratch_operands = 0 : i64, tpu.core_type = #tpu.core_type<tc>, window_params = [{transform_indices = @transform_0, window_bounds = array<i64: 16, 32>}, {pipeline_mode = #tpu.pipeline_mode<synchronous>, transform_indices = @transform_1, window_bounds = array<i64: 1, 32>}, {pipeline_mode = #tpu.pipeline_mode<synchronous>, transform_indices = @transform_2, window_bounds = array<i64: 1, 32>}, {transform_indices = @transform_3, window_bounds = array<i64: 32, 32>}, {transform_indices = @transform_4, window_bounds = array<i64: 16, 32>}]} {
    %c0 = arith.constant 0 : index
    %c0_0 = arith.constant 0 : index
    %0 = vector.load %arg2[%c0, %c0_0] : memref<16x32xf32, #tpu.memory_space<vmem>>, vector<16x32xf32>
    %cst = arith.constant dense<0.000000e+00> : vector<16xf32>
    %1 = vector.multi_reduction <add>, %0, %cst [1] : vector<16x32xf32> to vector<16xf32>
    %2 = vector.shape_cast %1 : vector<16xf32> to vector<16x1xf32>
    %cst_1 = arith.constant 3.200000e+01 : f32
    %3 = vector.broadcast %cst_1 : f32 to vector<16x1xf32>
    %4 = arith.divf %2, %3 : vector<16x1xf32>
    %5 = vector.broadcast %4 : vector<16x1xf32> to vector<16x32xf32>
    %6 = arith.subf %0, %5 : vector<16x32xf32>
    %7 = arith.mulf %6, %6 : vector<16x32xf32>
    %cst_2 = arith.constant dense<0.000000e+00> : vector<16xf32>
    %8 = vector.multi_reduction <add>, %7, %cst_2 [1] : vector<16x32xf32> to vector<16xf32>
    %9 = vector.shape_cast %8 : vector<16xf32> to vector<16x1xf32>
    %cst_3 = arith.constant 3.200000e+01 : f32
    %10 = vector.broadcast %cst_3 : f32 to vector<16x1xf32>
    %11 = arith.divf %9, %10 : vector<16x1xf32>
    %12 = vector.broadcast %4 : vector<16x1xf32> to vector<16x32xf32>
    %13 = arith.subf %0, %12 : vector<16x32xf32>
    %cst_4 = arith.constant 9.99999974E-6 : f32
    %14 = vector.broadcast %cst_4 : f32 to vector<16x1xf32>
    %15 = arith.addf %11, %14 : vector<16x1xf32>
    %16 = math.rsqrt %15 : vector<16x1xf32>
    %17 = vector.broadcast %16 : vector<16x1xf32> to vector<16x32xf32>
    %18 = arith.mulf %13, %17 : vector<16x32xf32>
    %c0_5 = arith.constant 0 : index
    %c0_6 = arith.constant 0 : index
    %19 = vector.load %arg3[%c0_5, %c0_6] : memref<1x32xf32, #tpu.memory_space<vmem>>, vector<1x32xf32>
    %20 = vector.broadcast %19 : vector<1x32xf32> to vector<16x32xf32>
    %21 = arith.mulf %18, %20 : vector<16x32xf32>
    %c0_7 = arith.constant 0 : index
    %c0_8 = arith.constant 0 : index
    %22 = vector.load %arg4[%c0_7, %c0_8] : memref<1x32xf32, #tpu.memory_space<vmem>>, vector<1x32xf32>
    %23 = vector.broadcast %22 : vector<1x32xf32> to vector<16x32xf32>
    %24 = arith.addf %21, %23 : vector<16x32xf32>
    %25 = arith.truncf %24 : vector<16x32xf32> to vector<16x32xbf16>
    %c0_9 = arith.constant 0 : index
    %c0_10 = arith.constant 0 : index
    %26 = vector.load %arg5[%c0_9, %c0_10] : memref<32x32xbf16, #tpu.memory_space<vmem>>, vector<32x32xbf16>
    %cst_11 = arith.constant dense<0.000000e+00> : vector<16x32xf32>
    %27 = tpu.matmul %25, %26, %cst_11 {dimension_numbers = #tpu.dot_dimension_numbers<[1], [0], [0], [1], [0, 0, 1, 1], [], []>} : vector<16x32xbf16>, vector<32x32xbf16>, vector<16x32xf32> -> vector<16x32xf32>
    %28 = arith.truncf %27 : vector<16x32xf32> to vector<16x32xbf16>
    %c0_12 = arith.constant 0 : index
    %c0_13 = arith.constant 0 : index
    %29 = vector.load %arg6[%c0_12, %c0_13] : memref<16x32xbf16, #tpu.memory_space<vmem>>, vector<16x32xbf16>
    tpu.vector_store %arg6[%c0_12, %c0_13], %28 {strides = array<i32>} : memref<16x32xbf16, #tpu.memory_space<vmem>>, vector<16x32xbf16>,
    return
  }
  func.func @transform_0(%arg0: i32, %arg1: i32) -> (i32, i32) {
    %c0_i32 = arith.constant 0 : i32
    %c0_i32_0 = arith.constant 0 : i32
    return %arg0, %c0_i32 : i32, i32
  }
  func.func @transform_1(%arg0: i32, %arg1: i32) -> (i32, i32) {
    %c0_i32 = arith.constant 0 : i32
    %c0_i32_0 = arith.constant 0 : i32
    %c0_i32_1 = arith.constant 0 : i32
    return %c0_i32, %c0_i32_0 : i32, i32
  }
  func.func @transform_2(%arg0: i32, %arg1: i32) -> (i32, i32) {
    %c0_i32 = arith.constant 0 : i32
    %c0_i32_0 = arith.constant 0 : i32
    %c0_i32_1 = arith.constant 0 : i32
    return %c0_i32, %c0_i32_0 : i32, i32
  }
  func.func @transform_3(%arg0: i32, %arg1: i32) -> (i32, i32) {
    %c0_i32 = arith.constant 0 : i32
    %c0_i32_0 = arith.constant 0 : i32
    return %c0_i32, %arg1 : i32, i32
  }
  func.func @transform_4(%arg0: i32, %arg1: i32) -> (i32, i32) {
    %c0_i32 = arith.constant 0 : i32
    return %arg0, %arg1 : i32, i32
  }
}

module attributes {stable_mosaic.version = 11 : i64} {
  func.func @_project_kernel(%arg0: i32, %arg1: i32, %arg2: memref<16x16xf32, #tpu.memory_space<vmem>>, %arg3: memref<16x32xbf16, #tpu.memory_space<vmem>>, %arg4: memref<16x32xbf16, #tpu.memory_space<vmem>>, %arg5: memref<16x32xbf16, #tpu.memory_space<vmem>>, %arg6: memref<16x32xbf16, #tpu.memory_space<vmem>>) attributes {dimension_semantics = [#tpu.dimension_semantics<parallel>, #tpu.dimension_semantics<parallel>], iteration_bounds = array<i64: 1, 1>, scalar_prefetch = 0 : i64, scratch_operands = 0 : i64, tpu.core_type = #tpu.core_type<tc>, window_params = [{transform_indices = @transform_0, window_bounds = array<i64: 16, 16>}, {transform_indices = @transform_1, window_bounds = array<i64: 16, 32>}, {transform_indices = @transform_2, window_bounds = array<i64: 16, 32>}, {transform_indices = @transform_3, window_bounds = array<i64: 16, 32>}, {transform_indices = @transform_4, window_bounds = array<i64: 16, 32>}]} {
    %c0 = arith.constant 0 : index
    %c0_0 = arith.constant 0 : index
    %0 = vector.load %arg2[%c0, %c0_0] : memref<16x16xf32, #tpu.memory_space<vmem>>, vector<16x16xf32>
    %1 = arith.truncf %0 : vector<16x16xf32> to vector<16x16xbf16>
    %c0_1 = arith.constant 0 : index
    %c0_2 = arith.constant 0 : index
    %2 = vector.load %arg3[%c0_1, %c0_2] : memref<16x32xbf16, #tpu.memory_space<vmem>>, vector<16x32xbf16>
    %cst = arith.constant dense<0.000000e+00> : vector<16x32xf32>
    %3 = tpu.matmul %1, %2, %cst {dimension_numbers = #tpu.dot_dimension_numbers<[1], [0], [0], [1], [0, 0, 1, 1], [], []>} : vector<16x16xbf16>, vector<16x32xbf16>, vector<16x32xf32> -> vector<16x32xf32>
    %4 = arith.truncf %3 : vector<16x32xf32> to vector<16x32xbf16>
    %c0_3 = arith.constant 0 : index
    %c0_4 = arith.constant 0 : index
    %5 = vector.load %arg5[%c0_3, %c0_4] : memref<16x32xbf16, #tpu.memory_space<vmem>>, vector<16x32xbf16>
    tpu.vector_store %arg5[%c0_3, %c0_4], %4 {strides = array<i32>} : memref<16x32xbf16, #tpu.memory_space<vmem>>, vector<16x32xbf16>,
    %c0_5 = arith.constant 0 : index
    %c0_6 = arith.constant 0 : index
    %6 = vector.load %arg4[%c0_5, %c0_6] : memref<16x32xbf16, #tpu.memory_space<vmem>>, vector<16x32xbf16>
    %cst_7 = arith.constant dense<0.000000e+00> : vector<16x32xf32>
    %7 = tpu.matmul %1, %6, %cst_7 {dimension_numbers = #tpu.dot_dimension_numbers<[1], [0], [0], [1], [0, 0, 1, 1], [], []>} : vector<16x16xbf16>, vector<16x32xbf16>, vector<16x32xf32> -> vector<16x32xf32>
    %8 = arith.truncf %7 : vector<16x32xf32> to vector<16x32xbf16>
    %c0_8 = arith.constant 0 : index
    %c0_9 = arith.constant 0 : index
    %9 = vector.load %arg6[%c0_8, %c0_9] : memref<16x32xbf16, #tpu.memory_space<vmem>>, vector<16x32xbf16>
    tpu.vector_store %arg6[%c0_8, %c0_9], %8 {strides = array<i32>} : memref<16x32xbf16, #tpu.memory_space<vmem>>, vector<16x32xbf16>,
    return
  }
  func.func @transform_0(%arg0: i32, %arg1: i32) -> (i32, i32) {
    %c0_i32 = arith.constant 0 : i32
    %c0_i32_0 = arith.constant 0 : i32
    return %arg0, %c0_i32 : i32, i32
  }
  func.func @transform_1(%arg0: i32, %arg1: i32) -> (i32, i32) {
    %c0_i32 = arith.constant 0 : i32
    %c0_i32_0 = arith.constant 0 : i32
    return %c0_i32, %arg1 : i32, i32
  }
  func.func @transform_2(%arg0: i32, %arg1: i32) -> (i32, i32) {
    %c0_i32 = arith.constant 0 : i32
    %c0_i32_0 = arith.constant 0 : i32
    return %c0_i32, %arg1 : i32, i32
  }
  func.func @transform_3(%arg0: i32, %arg1: i32) -> (i32, i32) {
    %c0_i32 = arith.constant 0 : i32
    return %arg0, %arg1 : i32, i32
  }
  func.func @transform_4(%arg0: i32, %arg1: i32) -> (i32, i32) {
    %c0_i32 = arith.constant 0 : i32
    return %arg0, %arg1 : i32, i32
  }
}

module attributes {stable_mosaic.version = 11 : i64} {
  func.func @_ln_geglu_kernel(%arg0: i32, %arg1: i32, %arg2: memref<16x32xf32, #tpu.memory_space<vmem>>, %arg3: memref<1x32xf32, #tpu.memory_space<vmem>>, %arg4: memref<1x32xf32, #tpu.memory_space<vmem>>, %arg5: memref<32x128xbf16, #tpu.memory_space<vmem>>, %arg6: memref<32x128xbf16, #tpu.memory_space<vmem>>, %arg7: memref<1x128xf32, #tpu.memory_space<vmem>>, %arg8: memref<1x128xf32, #tpu.memory_space<vmem>>, %arg9: memref<16x128xbf16, #tpu.memory_space<vmem>>) attributes {dimension_semantics = [#tpu.dimension_semantics<parallel>, #tpu.dimension_semantics<parallel>], iteration_bounds = array<i64: 1, 1>, scalar_prefetch = 0 : i64, scratch_operands = 0 : i64, tpu.core_type = #tpu.core_type<tc>, window_params = [{transform_indices = @transform_0, window_bounds = array<i64: 16, 32>}, {pipeline_mode = #tpu.pipeline_mode<synchronous>, transform_indices = @transform_1, window_bounds = array<i64: 1, 32>}, {pipeline_mode = #tpu.pipeline_mode<synchronous>, transform_indices = @transform_2, window_bounds = array<i64: 1, 32>}, {transform_indices = @transform_3, window_bounds = array<i64: 32, 128>}, {transform_indices = @transform_4, window_bounds = array<i64: 32, 128>}, {transform_indices = @transform_5, window_bounds = array<i64: 1, 128>}, {transform_indices = @transform_6, window_bounds = array<i64: 1, 128>}, {transform_indices = @transform_7, window_bounds = array<i64: 16, 128>}]} {
    %c0 = arith.constant 0 : index
    %c0_0 = arith.constant 0 : index
    %0 = vector.load %arg2[%c0, %c0_0] : memref<16x32xf32, #tpu.memory_space<vmem>>, vector<16x32xf32>
    %cst = arith.constant dense<0.000000e+00> : vector<16xf32>
    %1 = vector.multi_reduction <add>, %0, %cst [1] : vector<16x32xf32> to vector<16xf32>
    %2 = vector.shape_cast %1 : vector<16xf32> to vector<16x1xf32>
    %cst_1 = arith.constant 3.200000e+01 : f32
    %3 = vector.broadcast %cst_1 : f32 to vector<16x1xf32>
    %4 = arith.divf %2, %3 : vector<16x1xf32>
    %5 = vector.broadcast %4 : vector<16x1xf32> to vector<16x32xf32>
    %6 = arith.subf %0, %5 : vector<16x32xf32>
    %7 = arith.mulf %6, %6 : vector<16x32xf32>
    %cst_2 = arith.constant dense<0.000000e+00> : vector<16xf32>
    %8 = vector.multi_reduction <add>, %7, %cst_2 [1] : vector<16x32xf32> to vector<16xf32>
    %9 = vector.shape_cast %8 : vector<16xf32> to vector<16x1xf32>
    %cst_3 = arith.constant 3.200000e+01 : f32
    %10 = vector.broadcast %cst_3 : f32 to vector<16x1xf32>
    %11 = arith.divf %9, %10 : vector<16x1xf32>
    %12 = vector.broadcast %4 : vector<16x1xf32> to vector<16x32xf32>
    %13 = arith.subf %0, %12 : vector<16x32xf32>
    %cst_4 = arith.constant 9.99999974E-6 : f32
    %14 = vector.broadcast %cst_4 : f32 to vector<16x1xf32>
    %15 = arith.addf %11, %14 : vector<16x1xf32>
    %16 = math.rsqrt %15 : vector<16x1xf32>
    %17 = vector.broadcast %16 : vector<16x1xf32> to vector<16x32xf32>
    %18 = arith.mulf %13, %17 : vector<16x32xf32>
    %c0_5 = arith.constant 0 : index
    %c0_6 = arith.constant 0 : index
    %19 = vector.load %arg3[%c0_5, %c0_6] : memref<1x32xf32, #tpu.memory_space<vmem>>, vector<1x32xf32>
    %20 = vector.broadcast %19 : vector<1x32xf32> to vector<16x32xf32>
    %21 = arith.mulf %18, %20 : vector<16x32xf32>
    %c0_7 = arith.constant 0 : index
    %c0_8 = arith.constant 0 : index
    %22 = vector.load %arg4[%c0_7, %c0_8] : memref<1x32xf32, #tpu.memory_space<vmem>>, vector<1x32xf32>
    %23 = vector.broadcast %22 : vector<1x32xf32> to vector<16x32xf32>
    %24 = arith.addf %21, %23 : vector<16x32xf32>
    %25 = arith.truncf %24 : vector<16x32xf32> to vector<16x32xbf16>
    %c0_9 = arith.constant 0 : index
    %c0_10 = arith.constant 0 : index
    %26 = vector.load %arg5[%c0_9, %c0_10] : memref<32x128xbf16, #tpu.memory_space<vmem>>, vector<32x128xbf16>
    %cst_11 = arith.constant dense<0.000000e+00> : vector<16x128xf32>
    %27 = tpu.matmul %25, %26, %cst_11 {dimension_numbers = #tpu.dot_dimension_numbers<[1], [0], [0], [1], [0, 0, 1, 1], [], []>} : vector<16x32xbf16>, vector<32x128xbf16>, vector<16x128xf32> -> vector<16x128xf32>
    %c0_12 = arith.constant 0 : index
    %c0_13 = arith.constant 0 : index
    %28 = vector.load %arg7[%c0_12, %c0_13] : memref<1x128xf32, #tpu.memory_space<vmem>>, vector<1x128xf32>
    %29 = vector.broadcast %28 : vector<1x128xf32> to vector<16x128xf32>
    %30 = arith.addf %27, %29 : vector<16x128xf32>
    %c0_14 = arith.constant 0 : index
    %c0_15 = arith.constant 0 : index
    %31 = vector.load %arg6[%c0_14, %c0_15] : memref<32x128xbf16, #tpu.memory_space<vmem>>, vector<32x128xbf16>
    %cst_16 = arith.constant dense<0.000000e+00> : vector<16x128xf32>
    %32 = tpu.matmul %25, %31, %cst_16 {dimension_numbers = #tpu.dot_dimension_numbers<[1], [0], [0], [1], [0, 0, 1, 1], [], []>} : vector<16x32xbf16>, vector<32x128xbf16>, vector<16x128xf32> -> vector<16x128xf32>
    %c0_17 = arith.constant 0 : index
    %c0_18 = arith.constant 0 : index
    %33 = vector.load %arg8[%c0_17, %c0_18] : memref<1x128xf32, #tpu.memory_space<vmem>>, vector<1x128xf32>
    %34 = vector.broadcast %33 : vector<1x128xf32> to vector<16x128xf32>
    %35 = arith.addf %32, %34 : vector<16x128xf32>
    %cst_19 = arith.constant 5.000000e-01 : f32
    %36 = vector.broadcast %cst_19 : f32 to vector<16x128xf32>
    %37 = arith.mulf %36, %35 : vector<16x128xf32>
    %cst_20 = arith.constant 0.707106769 : f32
    %38 = vector.broadcast %cst_20 : f32 to vector<16x128xf32>
    %39 = arith.mulf %35, %38 : vector<16x128xf32>
    %40 = math.erf %39 : vector<16x128xf32>
    %cst_21 = arith.constant 1.000000e+00 : f32
    %41 = vector.broadcast %cst_21 : f32 to vector<16x128xf32>
    %42 = arith.addf %41, %40 : vector<16x128xf32>
    %43 = arith.mulf %37, %42 : vector<16x128xf32>
    %44 = arith.mulf %30, %43 : vector<16x128xf32>
    %45 = arith.truncf %44 : vector<16x128xf32> to vector<16x128xbf16>
    %c0_22 = arith.constant 0 : index
    %c0_23 = arith.constant 0 : index
    %46 = vector.load %arg9[%c0_22, %c0_23] : memref<16x128xbf16, #tpu.memory_space<vmem>>, vector<16x128xbf16>
    tpu.vector_store %arg9[%c0_22, %c0_23], %45 {strides = array<i32>} : memref<16x128xbf16, #tpu.memory_space<vmem>>, vector<16x128xbf16>,
    return
  }
  func.func @transform_0(%arg0: i32, %arg1: i32) -> (i32, i32) {
    %c0_i32 = arith.constant 0 : i32
    %c0_i32_0 = arith.constant 0 : i32
    return %arg0, %c0_i32 : i32, i32
  }
  func.func @transform_1(%arg0: i32, %arg1: i32) -> (i32, i32) {
    %c0_i32 = arith.constant 0 : i32
    %c0_i32_0 = arith.constant 0 : i32
    %c0_i32_1 = arith.constant 0 : i32
    return %c0_i32, %c0_i32_0 : i32, i32
  }
  func.func @transform_2(%arg0: i32, %arg1: i32) -> (i32, i32) {
    %c0_i32 = arith.constant 0 : i32
    %c0_i32_0 = arith.constant 0 : i32
    %c0_i32_1 = arith.constant 0 : i32
    return %c0_i32, %c0_i32_0 : i32, i32
  }
  func.func @transform_3(%arg0: i32, %arg1: i32) -> (i32, i32) {
    %c0_i32 = arith.constant 0 : i32
    %c0_i32_0 = arith.constant 0 : i32
    return %c0_i32, %arg1 : i32, i32
  }
  func.func @transform_4(%arg0: i32, %arg1: i32) -> (i32, i32) {
    %c0_i32 = arith.constant 0 : i32
    %c0_i32_0 = arith.constant 0 : i32
    return %c0_i32, %arg1 : i32, i32
  }
  func.func @transform_5(%arg0: i32, %arg1: i32) -> (i32, i32) {
    %c0_i32 = arith.constant 0 : i32
    %c0_i32_0 = arith.constant 0 : i32
    return %c0_i32, %arg1 : i32, i32
  }
  func.func @transform_6(%arg0: i32, %arg1: i32) -> (i32, i32) {
    %c0_i32 = arith.constant 0 : i32
    %c0_i32_0 = arith.constant 0 : i32
    return %c0_i32, %arg1 : i32, i32
  }
  func.func @transform_7(%arg0: i32, %arg1: i32) -> (i32, i32) {
    %c0_i32 = arith.constant 0 : i32
    return %arg0, %arg1 : i32, i32
  }
}

module attributes {stable_mosaic.version = 11 : i64} {
  func.func @_linear_kernel(%arg0: i32, %arg1: i32, %arg2: memref<16x128xbf16, #tpu.memory_space<vmem>>, %arg3: memref<128x32xbf16, #tpu.memory_space<vmem>>, %arg4: memref<1x32xf32, #tpu.memory_space<vmem>>, %arg5: memref<16x32xf32, #tpu.memory_space<vmem>>, %arg6: memref<16x32xf32, #tpu.memory_space<vmem>>) attributes {dimension_semantics = [#tpu.dimension_semantics<parallel>, #tpu.dimension_semantics<parallel>], iteration_bounds = array<i64: 1, 1>, scalar_prefetch = 0 : i64, scratch_operands = 0 : i64, tpu.core_type = #tpu.core_type<tc>, window_params = [{transform_indices = @transform_0, window_bounds = array<i64: 16, 128>}, {transform_indices = @transform_1, window_bounds = array<i64: 128, 32>}, {transform_indices = @transform_2, window_bounds = array<i64: 1, 32>}, {transform_indices = @transform_3, window_bounds = array<i64: 16, 32>}, {transform_indices = @transform_4, window_bounds = array<i64: 16, 32>}]} {
    %c0 = arith.constant 0 : index
    %c0_0 = arith.constant 0 : index
    %0 = vector.load %arg2[%c0, %c0_0] : memref<16x128xbf16, #tpu.memory_space<vmem>>, vector<16x128xbf16>
    %c0_1 = arith.constant 0 : index
    %c0_2 = arith.constant 0 : index
    %1 = vector.load %arg3[%c0_1, %c0_2] : memref<128x32xbf16, #tpu.memory_space<vmem>>, vector<128x32xbf16>
    %cst = arith.constant dense<0.000000e+00> : vector<16x32xf32>
    %2 = tpu.matmul %0, %1, %cst {dimension_numbers = #tpu.dot_dimension_numbers<[1], [0], [0], [1], [0, 0, 1, 1], [], []>} : vector<16x128xbf16>, vector<128x32xbf16>, vector<16x32xf32> -> vector<16x32xf32>
    %c0_3 = arith.constant 0 : index
    %c0_4 = arith.constant 0 : index
    %3 = vector.load %arg4[%c0_3, %c0_4] : memref<1x32xf32, #tpu.memory_space<vmem>>, vector<1x32xf32>
    %4 = vector.broadcast %3 : vector<1x32xf32> to vector<16x32xf32>
    %5 = arith.addf %2, %4 : vector<16x32xf32>
    %c0_5 = arith.constant 0 : index
    %c0_6 = arith.constant 0 : index
    %6 = vector.load %arg5[%c0_5, %c0_6] : memref<16x32xf32, #tpu.memory_space<vmem>>, vector<16x32xf32>
    %7 = arith.addf %5, %6 : vector<16x32xf32>
    %c0_7 = arith.constant 0 : index
    %c0_8 = arith.constant 0 : index
    %8 = vector.load %arg6[%c0_7, %c0_8] : memref<16x32xf32, #tpu.memory_space<vmem>>, vector<16x32xf32>
    tpu.vector_store %arg6[%c0_7, %c0_8], %7 {strides = array<i32>} : memref<16x32xf32, #tpu.memory_space<vmem>>, vector<16x32xf32>,
    return
  }
  func.func @transform_0(%arg0: i32, %arg1: i32) -> (i32, i32) {
    %c0_i32 = arith.constant 0 : i32
    %c0_i32_0 = arith.constant 0 : i32
    return %arg0, %c0_i32 : i32, i32
  }
  func.func @transform_1(%arg0: i32, %arg1: i32) -> (i32, i32) {
    %c0_i32 = arith.constant 0 : i32
    %c0_i32_0 = arith.constant 0 : i32
    return %c0_i32, %arg1 : i32, i32
  }
  func.func @transform_2(%arg0: i32, %arg1: i32) -> (i32, i32) {
    %c0_i32 = arith.constant 0 : i32
    %c0_i32_0 = arith.constant 0 : i32
    return %c0_i32, %arg1 : i32, i32
  }
  func.func @transform_3(%arg0: i32, %arg1: i32) -> (i32, i32) {
    %c0_i32 = arith.constant 0 : i32
    return %arg0, %arg1 : i32, i32
  }
  func.func @transform_4(%arg0: i32, %arg1: i32) -> (i32, i32) {
    %c0_i32 = arith.constant 0 : i32
    return %arg0, %arg1 : i32, i32
  }
}

</mosaic_0001>

<llo_original>
// kernel: _lambda_.11
$region0: #{_lambda_.11}
  #allocation0 [shape = 'u32[]', space=smem, size = 0x4, offset = 0x4, fixed_abs, tag = 'smem constant byte address 0x4 - core index']
  #allocation1 [shape = 'u32[72,128]{1,0:T(1,128)}', space=vmem, size = 0x9000, scoped, tag = 'internal scratch']
  %s0 = inlined_call_operand.vmem [shape: bf16[16,32], index: 0, kind: input, shape index: {}]
  %s1 = inlined_call_operand.vmem [shape: bf16[32,32], index: 1, kind: input, shape index: {}]
  %s2 = inlined_call_operand.vmem [shape: f32[1,32], index: 2, kind: input, shape index: {}]
  %s3 = inlined_call_operand.vmem [shape: f32[16,32], index: 3, kind: input, shape index: {}]
  %s4 = inlined_call_operand.vmem [shape: f32[16,32], index: 4, kind: output, shape index: {}]
  %s5 = sld [smem:[#allocation0]]
  $region26: #{_lambda_.11} parent=0
    _
  %s7 = ssub.s32 1, %s5
  %s8 = scalar_select 0, %s7, %s5
  // Predicated region
  $region2: #{_lambda_.11} parent=0 // pred_check
    _
  $region3: #{_lambda_.11} parent=0 // pred_check_branch
    %10 = sbr.rel (0) target = $region5
  $region4: #{_lambda_.11} parent=0 // pred_region
    _
  $region5: #{_lambda_.11} parent=0 // pred_fallthru
    _
  // Predicated region
  $region6: #{_lambda_.11} parent=0 // pred_check
    _
  $region7: #{_lambda_.11} parent=0 // pred_check_branch
    %12 = sbr.rel (0) target = $region9
  $region8: #{_lambda_.11} parent=0 // pred_region
    _
  $region9: #{_lambda_.11} parent=0 // pred_fallthru
    _
  // Predicated region
  $region10: #{_lambda_.11} parent=0 // pred_check
    _
  $region11: #{_lambda_.11} parent=0 // pred_check_branch
    %14 = sbr.rel (0) target = $region13
  $region12: #{_lambda_.11} parent=0 // pred_region
    _
  $region13: #{_lambda_.11} parent=0 // pred_fallthru
    _
  // Predicated region
  $region14: #{_lambda_.11} parent=0 // pred_check
    _
  $region15: #{_lambda_.11} parent=0 // pred_check_branch
    %16 = sbr.rel (0) target = $region17
  $region16: #{_lambda_.11} parent=0 // pred_region
    _
  $region17: #{_lambda_.11} parent=0 // pred_fallthru
    _
  %v18 = vld [vmem:[%s0] sm:$0xf]
  %v19 = vld [vmem:[%s0 + $0x4] sm:$0xf]
  %v20 = vld [vmem:[%s1] sm:$0xf]
  %v21 = vld [vmem:[%s1 + $0x4] sm:$0xf]
  %v22 = vld [vmem:[%s1 + $0x8] sm:$0xf]
  %v23 = vld [vmem:[%s1 + $0xc] sm:$0xf]
  %v24 = vld [vmem:[%s2] sm:$0x1]
  %v26 = vperm.slane %v24, 0
  %v30 = vunpack.c.l.b16 %v18
  %v31 = vunpack.c.l.b16 %v19
  %v32 = vpack.c.b16 %v31, %v30
  %v37 = vunpack.c.l.b16 %v20
  %v38 = vunpack.c.l.b16 %v21
  %v39 = vunpack.c.l.b16 %v22
  %v40 = vunpack.c.l.b16 %v23
  %v41 = vpack.c.b16 %v38, %v37
  %v42 = vpack.c.b16 %v40, %v39
  %vm45 = vcmask 261120
  %v47 = vsel %vm45, %v32, 0
  %49 = vmatpush.bf16.msra.mxu0 0
  %50 = vmatpush.bf16.msra.mxu0 0
  %51 = vmatpush.bf16.msra.mxu0 0
  %52 = vmatpush.bf16.msra.mxu0 0
  %53 = vmatpush.bf16.msra.mxu0 0
  %54 = vmatpush.bf16.msra.mxu0 0
  %55 = vmatpush.bf16.msra.mxu0 %v42
  %56 = vmatpush.bf16.msra.mxu0 %v41
  %57 = vmatmul.bf16.gmra.mxu0 %v47
  %v58 = vpop.f32.mrf.mxu0
  %v59 = vadd.f32 %v26, %v58
  %v60 = vpop.f32.mrf.mxu0
  %v61 = vadd.f32 %v26, %v60
  %62 = vdwg.mxu0
  %v63 = vld [vmem:[%s3] sm:$0xff]
  %v64 = vld [vmem:[%s3 + $0x8] sm:$0xff]
  %v65 = vadd.f32 %v59, %v63
  %v66 = vadd.f32 %v61, %v64
  %67 = vst.msk [vmem:[%s4] sm:$0xff] %vm45, %v65
  %68 = vst.msk [vmem:[%s4 + $0x8] sm:$0xff] %vm45, %v66
  // Predicated region
  $region18: #{_lambda_.11} parent=0 // pred_check
    _
  $region19: #{_lambda_.11} parent=0 // pred_check_branch
    %70 = sbr.rel (0) target = $region21
  $region20: #{_lambda_.11} parent=0 // pred_region
    _
  $region21: #{_lambda_.11} parent=0 // pred_fallthru
    _
  // Predicated region
  $region22: #{_lambda_.11} parent=0 // pred_check
    _
  $region23: #{_lambda_.11} parent=0 // pred_check_branch
    %72 = sbr.rel (0) target = $region25
  $region24: #{_lambda_.11} parent=0 // pred_region
    _
  $region25: #{_lambda_.11} parent=0 // pred_fallthru
    _

// kernel: _lambda_.9
$region0: #{_lambda_.9}
  #allocation0 [shape = 'u32[]', space=smem, size = 0x4, offset = 0x4, fixed_abs, tag = 'smem constant byte address 0x4 - core index']
  #allocation1 [shape = 'u32[72,128]{1,0:T(1,128)}', space=vmem, size = 0x9000, scoped, tag = 'internal scratch']
  %s0 = inlined_call_operand.vmem [shape: f32[16,32], index: 0, kind: input, shape index: {}]
  %s1 = inlined_call_operand.vmem [shape: f32[1,32], index: 1, kind: input, shape index: {}]
  %s2 = inlined_call_operand.vmem [shape: f32[1,32], index: 2, kind: input, shape index: {}]
  %s3 = inlined_call_operand.vmem [shape: bf16[32,32], index: 3, kind: input, shape index: {}]
  %s4 = inlined_call_operand.vmem [shape: bf16[32,32], index: 4, kind: input, shape index: {}]
  %s5 = inlined_call_operand.hbm [shape: bf16[32,32], index: 5, kind: input, shape index: {}]
  %s6 = inlined_call_operand.vmem [shape: bf16[16,32], index: 6, kind: output, shape index: {0}]
  %s7 = inlined_call_operand.vmem [shape: bf16[16,32], index: 7, kind: output, shape index: {1}]
  %s8 = inlined_call_operand.vmem [shape: bf16[16,32], index: 8, kind: output, shape index: {2}]
  %9 = xla_tuple %s6, %s7, %s8
  %s10 = sld [smem:[#allocation0]]
  $region54: #{_lambda_.9} parent=0
    _
  %s12 = ssub.s32 1, %s10
  %s13 = scalar_select 0, %s12, %s10
  $region1: #{_lambda_.9} parent=0
    #allocation2 [shape = 'u8[8192]{0}', space=vmem, size = 0x2000, scoped, tag = 'input window, operand 5, single buffered']
    #allocation3 [shape = 's32[1]{0}', space=sflag, size = 0x4, scoped, tag = 'scoped memory for _lambda_.9']
    %14 = vsyncpa [#allocation3], 0
    // Predicated region
    $region2: #{_lambda_.9} parent=1 // pred_check
      _
    $region3: #{_lambda_.9} parent=1 // pred_check_branch
      %16 = sbr.rel (0) target = $region5
    $region4: #{_lambda_.9} parent=1 // pred_region
      _
    $region5: #{_lambda_.9} parent=1 // pred_fallthru
      _
    // Predicated region
    $region6: #{_lambda_.9} parent=1 // pred_check
      _
    $region7: #{_lambda_.9} parent=1 // pred_check_branch
      %18 = sbr.rel (0) target = $region9
    $region8: #{_lambda_.9} parent=1 // pred_region
      _
    $region9: #{_lambda_.9} parent=1 // pred_fallthru
      _
    // Predicated region
    $region10: #{_lambda_.9} parent=1 // pred_check
      _
    $region11: #{_lambda_.9} parent=1 // pred_check_branch
      %20 = sbr.rel (0) target = $region13
    $region12: #{_lambda_.9} parent=1 // pred_region
      _
    $region13: #{_lambda_.9} parent=1 // pred_fallthru
      _
    // Predicated region
    $region14: #{_lambda_.9} parent=1 // pred_check
      _
    $region15: #{_lambda_.9} parent=1 // pred_check_branch
      %22 = sbr.rel (0) target = $region17
    $region16: #{_lambda_.9} parent=1 // pred_region
      _
    $region17: #{_lambda_.9} parent=1 // pred_fallthru
      _
    // Predicated region
    $region18: #{_lambda_.9} parent=1 // pred_check
      _
    $region19: #{_lambda_.9} parent=1 // pred_check_branch
      %24 = sbr.rel (0) target = $region21
    $region20: #{_lambda_.9} parent=1 // pred_region
      _
    $region21: #{_lambda_.9} parent=1 // pred_fallthru
      _
    // Predicated region
    $region22: #{_lambda_.9} parent=1 // pred_check
      _
    $region23: #{_lambda_.9} parent=1 // pred_check_branch
      %26 = sbr.rel (0) target = $region25
    $region24: #{_lambda_.9} parent=1 // pred_region
      %28 = vsyncadd [#allocation3], 0
      %s29 = sshll.u32 %s5, 4
      %s30 = int_to_ptr.hbm [resolvable:$true] %s29
      %s31 = sshll.u32 [#allocation2], 4
      %s32 = int_to_ptr.vmem [resolvable:$true] %s31
      %37 = dma.hbm_to_vmem [thread:$0]  %s30, 256, %s32, [#allocation3], 64, 64, 4
    $region25: #{_lambda_.9} parent=1 // pred_fallthru
      _
    // Predicated region
    $region26: #{_lambda_.9} parent=1 // pred_check
      _
    $region27: #{_lambda_.9} parent=1 // pred_check_branch
      %39 = sbr.rel (0) target = $region29
    $region28: #{_lambda_.9} parent=1 // pred_region
      %41 = dma.done [#allocation3], 256
    $region29: #{_lambda_.9} parent=1 // pred_fallthru
      _
    %v43 = vld [vmem:[%s0] sm:$0xff]
    %v44 = vld [vmem:[%s0 + $0x8] sm:$0xff]
    %vm45 = vcmask 261120
    %v46 = vsel %vm45, %v43, 0.0
    %47 = vadd.xlane.f32.xlu0 %v46
    %v48 = vpop.xlane.xlu0 %47
    %v49 = vsel %vm45, %v44, 0.0
    %50 = vadd.xlane.f32.xlu0 %v49
    %v51 = vpop.xlane.xlu0 %50
    %v52 = vrcp.pop 32.0
    %v53 = vmul.f32 32.0, %v52
    %v54 = vsub.f32 1.0, %v53
    %v55 = vmul.f32 %v52, %v54
    %v56 = vadd.f32 %v52, %v55
    %vm57 = vweird.f32 %v52
    %v58 = vsel %vm57, %v52, %v56
    %v59 = vmul.f32 %v48, %v58
    %v60 = vmul.f32 %v51, %v58
    %v61 = vsub.f32 %v43, %v59
    %v62 = vsub.f32 %v44, %v60
    %v63 = vmul.f32 %v61, %v61
    %v64 = vmul.f32 %v62, %v62
    %v65 = vsel %vm45, %v63, 0.0
    %66 = vadd.xlane.f32.xlu0 %v65
    %v67 = vpop.xlane.xlu0 %66
    %v68 = vsel %vm45, %v64, 0.0
    %69 = vadd.xlane.f32.xlu0 %v68
    %v70 = vpop.xlane.xlu0 %69
    %v71 = vmul.f32 %v67, %v58
    %v72 = vmul.f32 %v70, %v58
    %v73 = vadd.f32 %v71, 1e-05
    %v74 = vadd.f32 %v72, 1e-05
    %v75 = vrsqrt.pop %v73
    %v76 = vmul.f32 %v75, %v73
    %v77 = vmul.f32 %v76, %v75
    %v78 = vmul.f32 0.5, %v77
    %v79 = vsub.f32 1.5, %v78
    %v80 = vmul.f32 %v75, %v79
    %vm81 = vweird.f32 %v73
    %vm82 = vweird.f32 %v75
    %vm83 = vmor %vm81, %vm82
    %v84 = vsel %vm83, %v75, %v80
    %v85 = vrsqrt.pop %v74
    %v86 = vmul.f32 %v85, %v74
    %v87 = vmul.f32 %v86, %v85
    %v88 = vmul.f32 0.5, %v87
    %v89 = vsub.f32 1.5, %v88
    %v90 = vmul.f32 %v85, %v89
    %vm91 = vweird.f32 %v74
    %vm92 = vweird.f32 %v85
    %vm93 = vmor %vm91, %vm92
    %v94 = vsel %vm93, %v85, %v90
    %v95 = vmul.f32 %v61, %v84
    %v96 = vmul.f32 %v62, %v94
    %v97 = vld [vmem:[%s1] sm:$0x1]
    %v99 = vperm.slane %v97, 0
    %v101 = vmul.f32 %v95, %v99
    %v102 = vmul.f32 %v96, %v99
    %v103 = vld [vmem:[%s2] sm:$0x1]
    %v105 = vperm.slane %v103, 0
    %v107 = vadd.f32 %v101, %v105
    %v108 = vadd.f32 %v102, %v105
    %v109 = vpack.c.bf16 %v108, %v107
    %v110 = vld [vmem:[%s3] sm:$0xf]
    %v111 = vld [vmem:[%s3 + $0x4] sm:$0xf]
    %v112 = vld [vmem:[%s3 + $0x8] sm:$0xf]
    %v113 = vld [vmem:[%s3 + $0xc] sm:$0xf]
    %v118 = vunpack.c.l.b16 %v110
    %v119 = vunpack.c.l.b16 %v111
    %v120 = vunpack.c.l.b16 %v112
    %v121 = vunpack.c.l.b16 %v113
    %v122 = vpack.c.b16 %v119, %v118
    %v123 = vpack.c.b16 %v121, %v120
    %v127 = vsel %vm45, %v109, 0
    %129 = vmatpush.bf16.msra.mxu0 0
    %130 = vmatpush.bf16.msra.mxu0 0
    %131 = vmatpush.bf16.msra.mxu0 0
    %132 = vmatpush.bf16.msra.mxu0 0
    %133 = vmatpush.bf16.msra.mxu0 0
    %134 = vmatpush.bf16.msra.mxu0 0
    %135 = vmatpush.bf16.msra.mxu0 %v123
    %136 = vmatpush.bf16.msra.mxu0 %v122
    %137 = vmatmul.bf16.gmra.mxu0 %v127
    %v138 = vpop.f32.mrf.mxu0
    %v139 = vadd.f32 0.0, %v138
    %v140 = vpop.f32.mrf.mxu0
    %v141 = vadd.f32 0.0, %v140
    %142 = vdwg.mxu0
    %v143 = vpack.c.bf16 %v139, %v139
    %v144 = vpack.c.bf16 %v141, %v141
    %vm145 = vcmask 257024
    %146 = vst.msk [vmem:[%s6] sm:$0xf] %vm145, %v143
    %147 = vst.msk [vmem:[%s6 + $0x4] sm:$0xf] %vm145, %v144
    %v148 = vld [vmem:[%s4] sm:$0xf]
    %v149 = vld [vmem:[%s4 + $0x4] sm:$0xf]
    %v150 = vld [vmem:[%s4 + $0x8] sm:$0xf]
    %v151 = vld [vmem:[%s4 + $0xc] sm:$0xf]
    %v156 = vunpack.c.l.b16 %v148
    %v157 = vunpack.c.l.b16 %v149
    %v158 = vunpack.c.l.b16 %v150
    %v159 = vunpack.c.l.b16 %v151
    %v160 = vpack.c.b16 %v157, %v156
    %v161 = vpack.c.b16 %v159, %v158
    %164 = vmatpush.bf16.msra.mxu0 0
    %165 = vmatpush.bf16.msra.mxu0 0
    %166 = vmatpush.bf16.msra.mxu0 0
    %167 = vmatpush.bf16.msra.mxu0 0
    %168 = vmatpush.bf16.msra.mxu0 0
    %169 = vmatpush.bf16.msra.mxu0 0
    %170 = vmatpush.bf16.msra.mxu0 %v161
    %171 = vmatpush.bf16.msra.mxu0 %v160
    %172 = vmatmul.bf16.gmra.mxu0 %v127
    %v173 = vpop.f32.mrf.mxu0
    %v174 = vadd.f32 0.0, %v173
    %v175 = vpop.f32.mrf.mxu0
    %v176 = vadd.f32 0.0, %v175
    %177 = vdwg.mxu0
    %v178 = vpack.c.bf16 %v174, %v174
    %v179 = vpack.c.bf16 %v176, %v176
    %180 = vst.msk [vmem:[%s7] sm:$0xf] %vm145, %v178
    %181 = vst.msk [vmem:[%s7 + $0x4] sm:$0xf] %vm145, %v179
    %v182 = vld [vmem:[#allocation2] sm:$0xf]
    %v183 = vld [vmem:[#allocation2 + $0x4] sm:$0xf]
    %v184 = vld [vmem:[#allocation2 + $0x8] sm:$0xf]
    %v185 = vld [vmem:[#allocation2 + $0xc] sm:$0xf]
    %v190 = vunpack.c.l.b16 %v182
    %v191 = vunpack.c.l.b16 %v183
    %v192 = vunpack.c.l.b16 %v184
    %v193 = vunpack.c.l.b16 %v185
    %v194 = vpack.c.b16 %v191, %v190
    %v195 = vpack.c.b16 %v193, %v192
    %198 = vmatpush.bf16.msra.mxu0 0
    %199 = vmatpush.bf16.msra.mxu0 0
    %200 = vmatpush.bf16.msra.mxu0 0
    %201 = vmatpush.bf16.msra.mxu0 0
    %202 = vmatpush.bf16.msra.mxu0 0
    %203 = vmatpush.bf16.msra.mxu0 0
    %204 = vmatpush.bf16.msra.mxu0 %v195
    %205 = vmatpush.bf16.msra.mxu0 %v194
    %206 = vmatmul.bf16.gmra.mxu0 %v127
    %v207 = vpop.f32.mrf.mxu0
    %v208 = vadd.f32 0.0, %v207
    %v209 = vpop.f32.mrf.mxu0
    %v210 = vadd.f32 0.0, %v209
    %211 = vdwg.mxu0
    %v212 = vpack.c.bf16 %v208, %v208
    %v213 = vpack.c.bf16 %v210, %v210
    %214 = vst.msk [vmem:[%s8] sm:$0xf] %vm145, %v212
    %215 = vst.msk [vmem:[%s8 + $0x4] sm:$0xf] %vm145, %v213
    // Predicated region
    $region30: #{_lambda_.9} parent=1 // pred_check
      _
    $region31: #{_lambda_.9} parent=1 // pred_check_branch
      %217 = sbr.rel (0) target = $region33
    $region32: #{_lambda_.9} parent=1 // pred_region
      _
    $region33: #{_lambda_.9} parent=1 // pred_fallthru
      _
    // Predicated region
    $region34: #{_lambda_.9} parent=1 // pred_check
      _
    $region35: #{_lambda_.9} parent=1 // pred_check_branch
      %219 = sbr.rel (0) target = $region37
    $region36: #{_lambda_.9} parent=1 // pred_region
      _
    $region37: #{_lambda_.9} parent=1 // pred_fallthru
      _
    // Predicated region
    $region38: #{_lambda_.9} parent=1 // pred_check
      _
    $region39: #{_lambda_.9} parent=1 // pred_check_branch
      %221 = sbr.rel (0) target = $region41
    $region40: #{_lambda_.9} parent=1 // pred_region
      _
    $region41: #{_lambda_.9} parent=1 // pred_fallthru
      _
    // Predicated region
    $region42: #{_lambda_.9} parent=1 // pred_check
      _
    $region43: #{_lambda_.9} parent=1 // pred_check_branch
      %223 = sbr.rel (0) target = $region45
    $region44: #{_lambda_.9} parent=1 // pred_region
      _
    $region45: #{_lambda_.9} parent=1 // pred_fallthru
      _
    // Predicated region
    $region46: #{_lambda_.9} parent=1 // pred_check
      _
    $region47: #{_lambda_.9} parent=1 // pred_check_branch
      %225 = sbr.rel (0) target = $region49
    $region48: #{_lambda_.9} parent=1 // pred_region
      _
    $region49: #{_lambda_.9} parent=1 // pred_fallthru
      _
    // Predicated region
    $region50: #{_lambda_.9} parent=1 // pred_check
      _
    $region51: #{_lambda_.9} parent=1 // pred_check_branch
      %227 = sbr.rel (0) target = $region53
    $region52: #{_lambda_.9} parent=1 // pred_region
      _
    $region53: #{_lambda_.9} parent=1 // pred_fallthru
      _
    %228 = vsyncpa [#allocation3], 1

// kernel: _lambda_.10
$region0: #{_lambda_.10}
  #allocation0 [shape = 'u32[]', space=smem, size = 0x4, offset = 0x4, fixed_abs, tag = 'smem constant byte address 0x4 - core index']
  #allocation1 [shape = 'u32[72,128]{1,0:T(1,128)}', space=vmem, size = 0x9000, scoped, tag = 'internal scratch']
  #allocation2 [shape = 'f32[8,4]{1,0:T(8,128)}', space=vmem, size = 0x1000, scoped, tag = 'scratch operand']
  #allocation3 [shape = 'f32[8,4]{1,0:T(8,128)}', space=vmem, size = 0x1000, scoped, tag = 'scratch operand']
  #allocation4 [shape = 'f32[8,32]{1,0:T(8,128)}', space=vmem, size = 0x1000, scoped, tag = 'scratch operand']
  %s0 = inlined_call_operand.vmem [shape: bf16[2,8,32], index: 0, kind: input, shape index: {}]
  %s1 = inlined_call_operand.vmem [shape: bf16[2,8,32], index: 1, kind: input, shape index: {}]
  %s2 = inlined_call_operand.vmem [shape: bf16[2,8,32], index: 2, kind: input, shape index: {}]
  %s3 = inlined_call_operand.vmem [shape: bf16[2,8,32], index: 3, kind: output, shape index: {}]
  %s4 = sld [smem:[#allocation0]]
  $region53: #{_lambda_.10} parent=0
    _
  %s6 = ssub.s32 1, %s4
  %s7 = scalar_select 0, %s6, %s4
  loop: start=0, step=1, limit=4
  $region2: #{_lambda_.10} parent=0 // loop_pre_header
    _
  $region3: #{_lambda_.10} parent=0 // loop_header
    %s9 = sphi 0, %s13
    %p10 = scmp.ge.s32.totalorder %s9, 4
    %s16 = sphi 0, %s35
    %s17 = sphi 0, %s31
    %s18 = sphi 0, %s27
    %s19 = sphi 0, %s16
    %s20 = sphi 0, %s17
    %s21 = sphi 0, %s18
    %s22 = sphi 0, %s19
    %s23 = sphi 0, %s20
    %s24 = sphi 0, %s21
    %s40 = sphi 0, %s42
    %s43 = sphi 0, %s40
    %s44 = sphi 0, %s43
    %s60 = sphi 0, %s44
    %s68 = sphi 0, %s70
    %s71 = sphi 0, %s68
    %s72 = sphi 0, %s71
    %s88 = sphi 0, %s72
    %s96 = sphi 0, %s98
    %s99 = sphi 0, %s96
    %s100 = sphi 0, %s99
    %s116 = sphi 0, %s100
    %s124 = sphi 0, %s126
    %s127 = sphi 0, %s124
    %s128 = sphi 0, %s127
    %s144 = sphi 0, %s128
  $region4: #{_lambda_.10} parent=0 // loop_header_branch
    %12 = sbr.rel (%p10) target = $region8
  $region5: #{_lambda_.10} parent=0 // loop_body
    %s14 = ssub.s32 %s9, 1
    %s15 = ssub.s32 %s9, 2
    %s25 = sadd.s32 1, %s18
    %p26 = scmp.ge.s32.totalorder %s25, 1
    %s27 = scalar_select %p26, 0, %s25
    %s28 = sadd.s32 1, %s17
    %s29 = scalar_select %p26, %s28, %s17
    %p30 = scmp.ge.s32.totalorder %s29, 2
    %s31 = scalar_select %p30, 0, %s29
    %s32 = sadd.s32 1, %s16
    %s33 = scalar_select %p30, %s32, %s16
    %p34 = scmp.ge.s32.totalorder %s33, 1
    %s35 = scalar_select %p34, 0, %s33
    %s36 = ssub.s32 %s17, %s31
    %s37 = ssub.s32 %s16, %s35
    %s38 = sor.u32 %s36, %s37
    %p39 = scmp.eq.s32.totalorder %s38, 0
    %s41 = sadd.s32 %s40, 1
    %s42 = scalar_select %p39, %s40, %s41
    %p45 = pneg %p39
    %p46 = scmp.eq.s32.totalorder %s9, 1
    %p47 = por %p45, %p46
    %p48 = scmp.ne.s32.totalorder %s40, %s43
    %p49 = scmp.eq.s32.totalorder %s9, 0
    %p50 = por %p48, %p49
    %p51 = scmp.ne.s32.totalorder %s40, %s43
    %p52 = scmp.eq.s32.totalorder %s14, 1
    %p53 = por %p51, %p52
    %p54 = scmp.ne.s32.totalorder %s43, %s44
    %p55 = scmp.eq.s32.totalorder %s14, 0
    %p56 = por %p54, %p55
    %p57 = scmp.ne.s32.totalorder %s43, %s44
    %p58 = scmp.eq.s32.totalorder %s15, 1
    %p59 = por %p57, %p58
    %p61 = scmp.ne.s32.totalorder %s44, %s60
    %p62 = scmp.eq.s32.totalorder %s15, 0
    %p63 = por %p61, %p62
    %s64 = ssub.s32 %s17, %s31
    %s65 = ssub.s32 %s18, %s27
    %s66 = sor.u32 %s64, %s65
    %p67 = scmp.eq.s32.totalorder %s66, 0
    %s69 = sadd.s32 %s68, 1
    %s70 = scalar_select %p67, %s68, %s69
    %p73 = pneg %p67
    %p74 = scmp.eq.s32.totalorder %s9, 1
    %p75 = por %p73, %p74
    %p76 = scmp.ne.s32.totalorder %s68, %s71
    %p77 = scmp.eq.s32.totalorder %s9, 0
    %p78 = por %p76, %p77
    %p79 = scmp.ne.s32.totalorder %s68, %s71
    %p80 = scmp.eq.s32.totalorder %s14, 1
    %p81 = por %p79, %p80
    %p82 = scmp.ne.s32.totalorder %s71, %s72
    %p83 = scmp.eq.s32.totalorder %s14, 0
    %p84 = por %p82, %p83
    %p85 = scmp.ne.s32.totalorder %s71, %s72
    %p86 = scmp.eq.s32.totalorder %s15, 1
    %p87 = por %p85, %p86
    %p89 = scmp.ne.s32.totalorder %s72, %s88
    %p90 = scmp.eq.s32.totalorder %s15, 0
    %p91 = por %p89, %p90
    %s92 = ssub.s32 %s17, %s31
    %s93 = ssub.s32 %s18, %s27
    %s94 = sor.u32 %s92, %s93
    %p95 = scmp.eq.s32.totalorder %s94, 0
    %s97 = sadd.s32 %s96, 1
    %s98 = scalar_select %p95, %s96, %s97
    %p101 = pneg %p95
    %p102 = scmp.eq.s32.totalorder %s9, 1
    %p103 = por %p101, %p102
    %p104 = scmp.ne.s32.totalorder %s96, %s99
    %p105 = scmp.eq.s32.totalorder %s9, 0
    %p106 = por %p104, %p105
    %p107 = scmp.ne.s32.totalorder %s96, %s99
    %p108 = scmp.eq.s32.totalorder %s14, 1
    %p109 = por %p107, %p108
    %p110 = scmp.ne.s32.totalorder %s99, %s100
    %p111 = scmp.eq.s32.totalorder %s14, 0
    %p112 = por %p110, %p111
    %p113 = scmp.ne.s32.totalorder %s99, %s100
    %p114 = scmp.eq.s32.totalorder %s15, 1
    %p115 = por %p113, %p114
    %p117 = scmp.ne.s32.totalorder %s100, %s116
    %p118 = scmp.eq.s32.totalorder %s15, 0
    %p119 = por %p117, %p118
    %s120 = ssub.s32 %s17, %s31
    %s121 = ssub.s32 %s16, %s35
    %s122 = sor.u32 %s120, %s121
    %p123 = scmp.eq.s32.totalorder %s122, 0
    %s125 = sadd.s32 %s124, 1
    %s126 = scalar_select %p123, %s124, %s125
    %p129 = pneg %p123
    %p130 = scmp.eq.s32.totalorder %s9, 1
    %p131 = por %p129, %p130
    %p132 = scmp.ne.s32.totalorder %s124, %s127
    %p133 = scmp.eq.s32.totalorder %s9, 0
    %p134 = por %p132, %p133
    %p135 = scmp.ne.s32.totalorder %s124, %s127
    %p136 = scmp.eq.s32.totalorder %s14, 1
    %p137 = por %p135, %p136
    %p138 = scmp.ne.s32.totalorder %s127, %s128
    %p139 = scmp.eq.s32.totalorder %s14, 0
    %p140 = por %p138, %p139
    %p141 = scmp.ne.s32.totalorder %s127, %s128
    %p142 = scmp.eq.s32.totalorder %s15, 1
    %p143 = por %p141, %p142
    %p145 = scmp.ne.s32.totalorder %s128, %s144
    %p146 = scmp.eq.s32.totalorder %s15, 0
    %p147 = por %p145, %p146
    %p148 = scmp.le.s32.totalorder 1, %s9
    %p149 = scmp.lt.s32.totalorder %s9, 3
    %p150 = pnand %p148, %p149
    %p151 = pneg %p150
    // Predicated region
    $region9: #{_lambda_.10} parent=5 // pred_check
      _
    $region10: #{_lambda_.10} parent=5 // pred_check_branch
      %153 = sbr.rel (%p150) target = $region12
    $region11: #{_lambda_.10} parent=5 // pred_region
      %s154 = ssub.s32 %s9, 1
    $region12: #{_lambda_.10} parent=5 // pred_fallthru
      _
    %p155 = scmp.lt.s32.totalorder %s9, 2
    // Predicated region
    $region13: #{_lambda_.10} parent=5 // pred_check
      %p156 = pneg %p155
    $region14: #{_lambda_.10} parent=5 // pred_check_branch
      %158 = sbr.rel (%p156) target = $region16
    $region15: #{_lambda_.10} parent=5 // pred_region
      // Predicated region
      $region17: #{_lambda_.10} parent=15 // pred_check
        %p159 = pneg %p50
      $region18: #{_lambda_.10} parent=15 // pred_check_branch
        %161 = sbr.rel (%p159) target = $region20
      $region19: #{_lambda_.10} parent=15 // pred_region
        %p162 = scmp.lt.s32.totalorder %s17, 1
        %s163 = scalar_select %p162, %s17, 1
        %p164 = scmp.lt.s32.totalorder %s16, 0
        %s165 = scalar_select %p164, %s16, 0
        %s166 = sadd.s32 %s165, %s163
        %s167 = smul.addr %s166, 4
        %s168 = scalar_lea.vmem %s0, %s167
      $region20: #{_lambda_.10} parent=15 // pred_fallthru
        _
      // Predicated region
      $region21: #{_lambda_.10} parent=15 // pred_check
        %p169 = pneg %p78
      $region22: #{_lambda_.10} parent=15 // pred_check_branch
        %171 = sbr.rel (%p169) target = $region24
      $region23: #{_lambda_.10} parent=15 // pred_region
        %p172 = scmp.lt.s32.totalorder %s17, 1
        %s173 = scalar_select %p172, %s17, 1
        %p174 = scmp.lt.s32.totalorder %s18, 0
        %s175 = scalar_select %p174, %s18, 0
        %s176 = sadd.s32 %s175, %s173
        %s177 = smul.addr %s176, 4
        %s178 = scalar_lea.vmem %s1, %s177
      $region24: #{_lambda_.10} parent=15 // pred_fallthru
        _
      // Predicated region
      $region25: #{_lambda_.10} parent=15 // pred_check
        %p179 = pneg %p106
      $region26: #{_lambda_.10} parent=15 // pred_check_branch
        %181 = sbr.rel (%p179) target = $region28
      $region27: #{_lambda_.10} parent=15 // pred_region
        %p182 = scmp.lt.s32.totalorder %s17, 1
        %s183 = scalar_select %p182, %s17, 1
        %p184 = scmp.lt.s32.totalorder %s18, 0
        %s185 = scalar_select %p184, %s18, 0
        %s186 = sadd.s32 %s185, %s183
        %s187 = smul.addr %s186, 4
        %s188 = scalar_lea.vmem %s2, %s187
      $region28: #{_lambda_.10} parent=15 // pred_fallthru
        _
    $region16: #{_lambda_.10} parent=5 // pred_fallthru
      _
    %p189 = scmp.le.s32.totalorder 1, %s9
    %p190 = scmp.lt.s32.totalorder %s9, 3
    %p191 = pnand %p189, %p190
    %p192 = pneg %p191
    // Predicated region
    $region29: #{_lambda_.10} parent=5 // pred_check
      _
    $region30: #{_lambda_.10} parent=5 // pred_check_branch
      %194 = sbr.rel (%p191) target = $region32
    $region31: #{_lambda_.10} parent=5 // pred_region
      %s195 = ssub.s32 %s9, 1
      %p196 = scmp.lt.s32.totalorder %s20, 1
      %s197 = scalar_select %p196, %s20, 1
      %p198 = scmp.lt.s32.totalorder %s19, 0
      %s199 = scalar_select %p198, %s19, 0
      %s200 = sadd.s32 %s199, %s197
      %s201 = smul.addr %s200, 4
      %s202 = scalar_lea.vmem %s0, %s201
      %p203 = pneg %p56
      %p204 = pneg %p53
      %p205 = scmp.lt.s32.totalorder %s20, 1
      %s206 = scalar_select %p205, %s20, 1
      %p207 = scmp.lt.s32.totalorder %s21, 0
      %s208 = scalar_select %p207, %s21, 0
      %s209 = sadd.s32 %s208, %s206
      %s210 = smul.addr %s209, 4
      %s211 = scalar_lea.vmem %s1, %s210
      %p212 = pneg %p84
      %p213 = pneg %p81
      %p214 = scmp.lt.s32.totalorder %s20, 1
      %s215 = scalar_select %p214, %s20, 1
      %p216 = scmp.lt.s32.totalorder %s21, 0
      %s217 = scalar_select %p216, %s21, 0
      %s218 = sadd.s32 %s217, %s215
      %s219 = smul.addr %s218, 4
      %s220 = scalar_lea.vmem %s2, %s219
      %p221 = pneg %p112
      %p222 = pneg %p109
      %p223 = pneg %p140
      %p224 = pneg %p137
      %p225 = scmp.lt.s32.totalorder %s20, 1
      %s226 = scalar_select %p225, %s20, 1
      %p227 = scmp.lt.s32.totalorder %s19, 0
      %s228 = scalar_select %p227, %s19, 0
      %s229 = sadd.s32 %s228, %s226
      %s230 = smul.addr %s229, 4
      %s231 = scalar_lea.vmem %s3, %s230
      %p232 = scmp.lt.s32.totalorder %s20, 1
      %s233 = scalar_select %p232, %s20, 1
      %p234 = scmp.lt.s32.totalorder %s19, 0
      %s235 = scalar_select %p234, %s19, 0
      %s236 = sadd.s32 %s235, %s233
      %s237 = smul.addr %s236, 4
      %s238 = scalar_lea.vmem %s0, %s237
      %p239 = scmp.lt.s32.totalorder %s20, 1
      %s240 = scalar_select %p239, %s20, 1
      %p241 = scmp.lt.s32.totalorder %s21, 0
      %s242 = scalar_select %p241, %s21, 0
      %s243 = sadd.s32 %s242, %s240
      %s244 = smul.addr %s243, 4
      %s245 = scalar_lea.vmem %s1, %s244
      %p246 = scmp.lt.s32.totalorder %s20, 1
      %s247 = scalar_select %p246, %s20, 1
      %p248 = scmp.lt.s32.totalorder %s21, 0
      %s249 = scalar_select %p248, %s21, 0
      %s250 = sadd.s32 %s249, %s247
      %s251 = smul.addr %s250, 4
      %s252 = scalar_lea.vmem %s2, %s251
      %p253 = scmp.lt.s32.totalorder %s20, 1
      %s254 = scalar_select %p253, %s20, 1
      %p255 = scmp.lt.s32.totalorder %s19, 0
      %s256 = scalar_select %p255, %s19, 0
      %s257 = sadd.s32 %s256, %s254
      %s258 = smul.addr %s257, 4
      %s259 = scalar_lea.vmem %s3, %s258
      %p261 = scmp.eq.s32.totalorder %s21, 0
      // Predicated region
      $region33: #{_lambda_.10} parent=31 // pred_check
        %p262 = pneg %p261
      $region34: #{_lambda_.10} parent=31 // pred_check_branch
        %264 = sbr.rel (%p262) target = $region36
      $region35: #{_lambda_.10} parent=31 // pred_region
        %vm265 = vcmask 31744
        %266 = vst.msk [vmem:[#allocation2] sm:$0xff] %vm265, -inf
        %267 = vst.msk [vmem:[#allocation3] sm:$0xff] %vm265, 0.0
        %vm268 = vcmask 261120
        %269 = vst.msk [vmem:[#allocation4] sm:$0xff] %vm268, 0.0
      $region36: #{_lambda_.10} parent=31 // pred_fallthru
        _
      %v270 = vld [vmem:[%s238] sm:$0xf]
      %v271 = vld [vmem:[%s245] sm:$0xf]
      %v272 = vld [vmem:[%s252] sm:$0xf]
      %vm273 = vcmask 64512
      %v275 = vsel %vm273, %v270, 0
      %v278 = vsel %vm273, %v271, 0
      %280 = vmatpush.bf16.xpose.msra.mxu0 0
      %281 = vmatpush.bf16.xpose.msra.mxu0 0
      %282 = vmatpush.bf16.xpose.msra.mxu0 0
      %283 = vmatpush.bf16.xpose.msra.mxu0 0
      %284 = vmatpush.bf16.xpose.msra.mxu0 0
      %285 = vmatpush.bf16.xpose.msra.mxu0 0
      %286 = vmatpush.bf16.xpose.msra.mxu0 0
      %287 = vmatpush.bf16.xpose.msra.mxu0 %v278
      %288 = vmatmul.bf16.gmra.mxu0 %v275
      %v289 = vpop.f32.mrf.mxu0
      %v290 = vadd.f32 0.0, %v289
      %v291 = vpop.f32.mrf.mxu0
      %292 = vdwg.mxu0
      %v293 = vld [vmem:[#allocation2] sm:$0xff]
      %v294 = vsel %vm273, %v290, -inf
      %295 = vmax.xlane.f32.xlu0 %v294
      %v296 = vpop.xlane.xlu0 %295
      %v297 = vmax.f32 %v293, %v296
      %v298 = vsub.f32 %v293, %v297
      %v299 = vmul.f32 %v298, 1.442695
      %v300 = vpow.pop %v299
      %302 = vset.pattern.permute.xlu0 0
      %303 = vperm.xlu0 %302, %v297
      %v304 = vpop.permute.xlu0 %303
      %v306 = vsub.f32 %v290, %v304
      %v307 = vmul.f32 %v306, 1.442695
      %v308 = vpow.pop %v307
      %v309 = vld [vmem:[#allocation3] sm:$0xff]
      %v310 = vmul.f32 %v300, %v309
      %v311 = vsel %vm273, %v308, 0.0
      %312 = vadd.xlane.f32.xlu0 %v311
      %v313 = vpop.xlane.xlu0 %312
      %v314 = vadd.f32 %v310, %v313
      %vm315 = vcmask 7168
      %316 = vst.msk [vmem:[#allocation3] sm:$0xff] %vm315, %v314
      %v317 = vpack.c.bf16 %v308, %v308
      %v319 = vsel %vm273, %v317, 0
      %vm321 = vcmask 1043456
      %v323 = vsel %vm321, %v272, 0
      %325 = vmatpush.bf16.msra.mxu0 0
      %326 = vmatpush.bf16.msra.mxu0 0
      %327 = vmatpush.bf16.msra.mxu0 0
      %328 = vmatpush.bf16.msra.mxu0 0
      %329 = vmatpush.bf16.msra.mxu0 0
      %330 = vmatpush.bf16.msra.mxu0 0
      %331 = vmatpush.bf16.msra.mxu0 0
      %332 = vmatpush.bf16.msra.mxu0 %v323
      %333 = vmatmul.bf16.gmra.mxu0 %v319
      %v334 = vpop.f32.mrf.mxu0
      %v335 = vadd.f32 0.0, %v334
      %v336 = vpop.f32.mrf.mxu0
      %337 = vdwg.mxu0
      %v338 = vld [vmem:[#allocation4] sm:$0xff]
      %340 = vset.pattern.permute.xlu0 0
      %341 = vperm.xlu0 %340, %v300
      %v342 = vpop.permute.xlu0 %341
      %v344 = vmul.f32 %v342, %v338
      %v345 = vadd.f32 %v344, %v335
      %346 = vst.msk [vmem:[#allocation4] sm:$0xff] %vm273, %v345
      %347 = vst.msk [vmem:[#allocation2] sm:$0xff] %vm315, %v297
      %v349 = vunpack.c.l.b16 %v270
      %v350 = vpack.c.b16 %v349, %v349
      %351 = vrot.lane.b32.xlu0 %v350, 120
      %v352 = vpop.permute.xlu0 %351
      %v354 = vunpack.c.l.b16 %v271
      %v355 = vpack.c.b16 %v354, %v354
      %356 = vrot.lane.b32.xlu0 %v355, 120
      %v357 = vpop.permute.xlu0 %356
      %v359 = vsel %vm273, %v352, 0
      %v362 = vsel %vm273, %v357, 0
      %364 = vmatpush.bf16.xpose.msra.mxu0 0
      %365 = vmatpush.bf16.xpose.msra.mxu0 0
      %366 = vmatpush.bf16.xpose.msra.mxu0 0
      %367 = vmatpush.bf16.xpose.msra.mxu0 0
      %368 = vmatpush.bf16.xpose.msra.mxu0 0
      %369 = vmatpush.bf16.xpose.msra.mxu0 0
      %370 = vmatpush.bf16.xpose.msra.mxu0 0
      %371 = vmatpush.bf16.xpose.msra.mxu0 %v362
      %372 = vmatmul.bf16.gmra.mxu0 %v359
      %v373 = vpop.f32.mrf.mxu0
      %v374 = vadd.f32 0.0, %v373
      %v375 = vpop.f32.mrf.mxu0
      %376 = vdwg.mxu0
      %v377 = vld [vmem:[#allocation2] sm:$0xff]
      %v378 = vsel %vm273, %v374, -inf
      %379 = vmax.xlane.f32.xlu0 %v378
      %v380 = vpop.xlane.xlu0 %379
      %v381 = vmax.f32 %v377, %v380
      %v382 = vsub.f32 %v377, %v381
      %v383 = vmul.f32 %v382, 1.442695
      %v384 = vpow.pop %v383
      %386 = vset.pattern.permute.xlu0 1
      %387 = vperm.xlu0 %386, %v381
      %v388 = vpop.permute.xlu0 %387
      %v390 = vsub.f32 %v374, %v388
      %v391 = vmul.f32 %v390, 1.442695
      %v392 = vpow.pop %v391
      %v393 = vld [vmem:[#allocation3] sm:$0xff]
      %v394 = vmul.f32 %v384, %v393
      %v395 = vsel %vm273, %v392, 0.0
      %396 = vadd.xlane.f32.xlu0 %v395
      %v397 = vpop.xlane.xlu0 %396
      %v398 = vadd.f32 %v394, %v397
      %vm399 = vcmask 15368
      %400 = vst.msk [vmem:[#allocation3] sm:$0xff] %vm399, %v398
      %v401 = vpack.c.bf16 %v392, %v392
      %v403 = vunpack.c.l.b16 %v272
      %v404 = vpack.c.b16 %v403, %v403
      %405 = vrot.lane.b32.xlu0 %v404, 120
      %v406 = vpop.permute.xlu0 %405
      %v408 = vsel %vm273, %v401, 0
      %v411 = vsel %vm321, %v406, 0
      %413 = vmatpush.bf16.msra.mxu0 0
      %414 = vmatpush.bf16.msra.mxu0 0
      %415 = vmatpush.bf16.msra.mxu0 0
      %416 = vmatpush.bf16.msra.mxu0 0
      %417 = vmatpush.bf16.msra.mxu0 0
      %418 = vmatpush.bf16.msra.mxu0 0
      %419 = vmatpush.bf16.msra.mxu0 0
      %420 = vmatpush.bf16.msra.mxu0 %v411
      %421 = vmatmul.bf16.gmra.mxu0 %v408
      %v422 = vpop.f32.mrf.mxu0
      %v423 = vadd.f32 0.0, %v422
      %v424 = vpop.f32.mrf.mxu0
      %425 = vdwg.mxu0
      %v426 = vld [vmem:[#allocation4] sm:$0xff]
      %428 = vset.pattern.permute.xlu0 1
      %429 = vperm.xlu0 %428, %v384
      %v430 = vpop.permute.xlu0 %429
      %v432 = vmul.f32 %v430, %v426
      %434 = vrot.lane.b32.xlu0 %v423, 8
      %v435 = vpop.permute.xlu0 %434
      %v437 = vadd.f32 %v432, %v435
      %vm438 = vcmask 130112
      %439 = vst.msk [vmem:[#allocation4] sm:$0xff] %vm438, %v437
      %440 = vst.msk [vmem:[#allocation2] sm:$0xff] %vm399, %v381
      %441 = vrot.lane.b32.xlu0 %v350, 112
      %v442 = vpop.permute.xlu0 %441
      %443 = vrot.lane.b32.xlu0 %v355, 112
      %v444 = vpop.permute.xlu0 %443
      %v446 = vsel %vm273, %v442, 0
      %v449 = vsel %vm273, %v444, 0
      %451 = vmatpush.bf16.xpose.msra.mxu0 0
      %452 = vmatpush.bf16.xpose.msra.mxu0 0
      %453 = vmatpush.bf16.xpose.msra.mxu0 0
      %454 = vmatpush.bf16.xpose.msra.mxu0 0
      %455 = vmatpush.bf16.xpose.msra.mxu0 0
      %456 = vmatpush.bf16.xpose.msra.mxu0 0
      %457 = vmatpush.bf16.xpose.msra.mxu0 0
      %458 = vmatpush.bf16.xpose.msra.mxu0 %v449
      %459 = vmatmul.bf16.gmra.mxu0 %v446
      %v460 = vpop.f32.mrf.mxu0
      %v461 = vadd.f32 0.0, %v460
      %v462 = vpop.f32.mrf.mxu0
      %463 = vdwg.mxu0
      %v464 = vld [vmem:[#allocation2] sm:$0xff]
      %v465 = vsel %vm273, %v461, -inf
      %466 = vmax.xlane.f32.xlu0 %v465
      %v467 = vpop.xlane.xlu0 %466
      %v468 = vmax.f32 %v464, %v467
      %v469 = vsub.f32 %v464, %v468
      %v470 = vmul.f32 %v469, 1.442695
      %v471 = vpow.pop %v470
      %473 = vset.pattern.permute.xlu0 2
      %474 = vperm.xlu0 %473, %v468
      %v475 = vpop.permute.xlu0 %474
      %v477 = vsub.f32 %v461, %v475
      %v478 = vmul.f32 %v477, 1.442695
      %v479 = vpow.pop %v478
      %v480 = vld [vmem:[#allocation3] sm:$0xff]
      %v481 = vmul.f32 %v471, %v480
      %v482 = vsel %vm273, %v479, 0.0
      %483 = vadd.xlane.f32.xlu0 %v482
      %v484 = vpop.xlane.xlu0 %483
      %v485 = vadd.f32 %v481, %v484
      %vm486 = vcmask 23568
      %487 = vst.msk [vmem:[#allocation3] sm:$0xff] %vm486, %v485
      %v488 = vpack.c.bf16 %v479, %v479
      %489 = vrot.lane.b32.xlu0 %v404, 112
      %v490 = vpop.permute.xlu0 %489
      %v492 = vsel %vm273, %v488, 0
      %v495 = vsel %vm321, %v490, 0
      %497 = vmatpush.bf16.msra.mxu0 0
      %498 = vmatpush.bf16.msra.mxu0 0
      %499 = vmatpush.bf16.msra.mxu0 0
      %500 = vmatpush.bf16.msra.mxu0 0
      %501 = vmatpush.bf16.msra.mxu0 0
      %502 = vmatpush.bf16.msra.mxu0 0
      %503 = vmatpush.bf16.msra.mxu0 0
      %504 = vmatpush.bf16.msra.mxu0 %v495
      %505 = vmatmul.bf16.gmra.mxu0 %v492
      %v506 = vpop.f32.mrf.mxu0
      %v507 = vadd.f32 0.0, %v506
      %v508 = vpop.f32.mrf.mxu0
      %509 = vdwg.mxu0
      %v510 = vld [vmem:[#allocation4] sm:$0xff]
      %512 = vset.pattern.permute.xlu0 2
      %513 = vperm.xlu0 %512, %v471
      %v514 = vpop.permute.xlu0 %513
      %v516 = vmul.f32 %v514, %v510
      %518 = vrot.lane.b32.xlu0 %v507, 16
      %v519 = vpop.permute.xlu0 %518
      %v521 = vadd.f32 %v516, %v519
      %vm522 = vcmask 195712
      %523 = vst.msk [vmem:[#allocation4] sm:$0xff] %vm522, %v521
      %524 = vst.msk [vmem:[#allocation2] sm:$0xff] %vm486, %v468
      %525 = vrot.lane.b32.xlu0 %v350, 104
      %v526 = vpop.permute.xlu0 %525
      %527 = vrot.lane.b32.xlu0 %v355, 104
      %v528 = vpop.permute.xlu0 %527
      %v530 = vsel %vm273, %v526, 0
      %v533 = vsel %vm273, %v528, 0
      %535 = vmatpush.bf16.xpose.msra.mxu0 0
      %536 = vmatpush.bf16.xpose.msra.mxu0 0
      %537 = vmatpush.bf16.xpose.msra.mxu0 0
      %538 = vmatpush.bf16.xpose.msra.mxu0 0
      %539 = vmatpush.bf16.xpose.msra.mxu0 0
      %540 = vmatpush.bf16.xpose.msra.mxu0 0
      %541 = vmatpush.bf16.xpose.msra.mxu0 0
      %542 = vmatpush.bf16.xpose.msra.mxu0 %v533
      %543 = vmatmul.bf16.gmra.mxu0 %v530
      %v544 = vpop.f32.mrf.mxu0
      %v545 = vadd.f32 0.0, %v544
      %v546 = vpop.f32.mrf.mxu0
      %547 = vdwg.mxu0
      %v548 = vld [vmem:[#allocation2] sm:$0xff]
      %v549 = vsel %vm273, %v545, -inf
      %550 = vmax.xlane.f32.xlu0 %v549
      %v551 = vpop.xlane.xlu0 %550
      %v552 = vmax.f32 %v548, %v551
      %v553 = vsub.f32 %v548, %v552
      %v554 = vmul.f32 %v553, 1.442695
      %v555 = vpow.pop %v554
      %557 = vset.pattern.permute.xlu0 3
      %558 = vperm.xlu0 %557, %v552
      %v559 = vpop.permute.xlu0 %558
      %v561 = vsub.f32 %v545, %v559
      %v562 = vmul.f32 %v561, 1.442695
      %v563 = vpow.pop %v562
      %v564 = vld [vmem:[#allocation3] sm:$0xff]
      %v565 = vmul.f32 %v555, %v564
      %v566 = vsel %vm273, %v563, 0.0
      %567 = vadd.xlane.f32.xlu0 %v566
      %v568 = vpop.xlane.xlu0 %567
      %v569 = vadd.f32 %v565, %v568
      %vm570 = vcmask 31768
      %571 = vst.msk [vmem:[#allocation3] sm:$0xff] %vm570, %v569
      %v572 = vpack.c.bf16 %v563, %v563
      %573 = vrot.lane.b32.xlu0 %v404, 104
      %v574 = vpop.permute.xlu0 %573
      %v576 = vsel %vm273, %v572, 0
      %v579 = vsel %vm321, %v574, 0
      %581 = vmatpush.bf16.msra.mxu0 0
      %582 = vmatpush.bf16.msra.mxu0 0
      %583 = vmatpush.bf16.msra.mxu0 0
      %584 = vmatpush.bf16.msra.mxu0 0
      %585 = vmatpush.bf16.msra.mxu0 0
      %586 = vmatpush.bf16.msra.mxu0 0
      %587 = vmatpush.bf16.msra.mxu0 0
      %588 = vmatpush.bf16.msra.mxu0 %v579
      %589 = vmatmul.bf16.gmra.mxu0 %v576
      %v590 = vpop.f32.mrf.mxu0
      %v591 = vadd.f32 0.0, %v590
      %v592 = vpop.f32.mrf.mxu0
      %593 = vdwg.mxu0
      %v594 = vld [vmem:[#allocation4] sm:$0xff]
      %596 = vset.pattern.permute.xlu0 3
      %597 = vperm.xlu0 %596, %v555
      %v598 = vpop.permute.xlu0 %597
      %v600 = vmul.f32 %v598, %v594
      %602 = vrot.lane.b32.xlu0 %v591, 24
      %v603 = vpop.permute.xlu0 %602
      %v605 = vadd.f32 %v600, %v603
      %vm606 = vcmask 261312
      %607 = vst.msk [vmem:[#allocation4] sm:$0xff] %vm606, %v605
      %608 = vst.msk [vmem:[#allocation2] sm:$0xff] %vm570, %v552
      // Predicated region
      $region37: #{_lambda_.10} parent=31 // pred_check
        %p609 = pneg %p261
      $region38: #{_lambda_.10} parent=31 // pred_check_branch
        %611 = sbr.rel (%p609) target = $region40
      $region39: #{_lambda_.10} parent=31 // pred_region
        %v612 = vld [vmem:[#allocation4] sm:$0xff]
        %v613 = vld [vmem:[#allocation3] sm:$0xff]
        %v614 = vrcp.pop %v613
        %616 = vset.pattern.permute.xlu0 0
        %617 = vperm.xlu0 %616, %v614
        %v618 = vpop.permute.xlu0 %617
        %v620 = vmul.f32 %v612, %v618
        %621 = vst.msk [vmem:[#allocation4] sm:$0xff] %vm273, %v620
        %v622 = vld [vmem:[#allocation4] sm:$0xff]
        %v623 = vld [vmem:[#allocation3] sm:$0xff]
        %v624 = vrcp.pop %v623
        %626 = vset.pattern.permute.xlu0 1
        %627 = vperm.xlu0 %626, %v624
        %v628 = vpop.permute.xlu0 %627
        %v630 = vmul.f32 %v622, %v628
        %631 = vst.msk [vmem:[#allocation4] sm:$0xff] %vm438, %v630
        %v632 = vld [vmem:[#allocation4] sm:$0xff]
        %v633 = vld [vmem:[#allocation3] sm:$0xff]
        %v634 = vrcp.pop %v633
        %636 = vset.pattern.permute.xlu0 2
        %637 = vperm.xlu0 %636, %v634
        %v638 = vpop.permute.xlu0 %637
        %v640 = vmul.f32 %v632, %v638
        %641 = vst.msk [vmem:[#allocation4] sm:$0xff] %vm522, %v640
        %v642 = vld [vmem:[#allocation4] sm:$0xff]
        %v643 = vld [vmem:[#allocation3] sm:$0xff]
        %v644 = vrcp.pop %v643
        %646 = vset.pattern.permute.xlu0 3
        %647 = vperm.xlu0 %646, %v644
        %v648 = vpop.permute.xlu0 %647
        %v650 = vmul.f32 %v642, %v648
        %651 = vst.msk [vmem:[#allocation4] sm:$0xff] %vm606, %v650
        %v652 = vld [vmem:[#allocation4] sm:$0xff]
        %v653 = vpack.c.bf16 %v652, %v652
        %vm654 = vcmask 257024
        %655 = vst.msk [vmem:[%s259] sm:$0xf] %vm654, %v653
      $region40: #{_lambda_.10} parent=31 // pred_fallthru
        _
      %p656 = scmp.lt.s32.totalorder %s20, 1
      %s657 = scalar_select %p656, %s20, 1
      %p658 = scmp.lt.s32.totalorder %s19, 0
      %s659 = scalar_select %p658, %s19, 0
      %s660 = sadd.s32 %s659, %s657
      %s661 = smul.addr %s660, 4
      %s662 = scalar_lea.vmem %s3, %s661
      // Predicated region
      $region41: #{_lambda_.10} parent=31 // pred_check
        %p663 = pneg %p137
      $region42: #{_lambda_.10} parent=31 // pred_check_branch
        %665 = sbr.rel (%p663) target = $region44
      $region43: #{_lambda_.10} parent=31 // pred_region
        _
      $region44: #{_lambda_.10} parent=31 // pred_fallthru
        _
    $region32: #{_lambda_.10} parent=5 // pred_fallthru
      _
    %p666 = scmp.le.s32.totalorder 2, %s9
    // Predicated region
    $region45: #{_lambda_.10} parent=5 // pred_check
      %p667 = pneg %p666
    $region46: #{_lambda_.10} parent=5 // pred_check_branch
      %669 = sbr.rel (%p667) target = $region48
    $region47: #{_lambda_.10} parent=5 // pred_region
      %s670 = ssub.s32 %s9, 2
      // Predicated region
      $region49: #{_lambda_.10} parent=47 // pred_check
        %p671 = pneg %p143
      $region50: #{_lambda_.10} parent=47 // pred_check_branch
        %673 = sbr.rel (%p671) target = $region52
      $region51: #{_lambda_.10} parent=47 // pred_region
        %p674 = scmp.lt.s32.totalorder %s23, 1
        %s675 = scalar_select %p674, %s23, 1
        %p676 = scmp.lt.s32.totalorder %s22, 0
        %s677 = scalar_select %p676, %s22, 0
        %s678 = sadd.s32 %s677, %s675
        %s679 = smul.addr %s678, 4
        %s680 = scalar_lea.vmem %s3, %s679
      $region52: #{_lambda_.10} parent=47 // pred_fallthru
        _
    $region48: #{_lambda_.10} parent=5 // pred_fallthru
      _
  $region6: #{_lambda_.10} parent=0 // loop_footer
    %s13 = sadd.s32 1, %s9
  $region7: #{_lambda_.10} parent=0 // loop_footer_branch
    %8 = sbr.rel target = $region3
  $region8: #{_lambda_.10} parent=0 // loop_exit
    _

// kernel: _lambda_.12
$region0: #{_lambda_.12}
  #allocation0 [shape = 'u32[]', space=smem, size = 0x4, offset = 0x4, fixed_abs, tag = 'smem constant byte address 0x4 - core index']
  #allocation1 [shape = 'u32[72,128]{1,0:T(1,128)}', space=vmem, size = 0x9000, scoped, tag = 'internal scratch']
  %s0 = inlined_call_operand.vmem [shape: f32[16,32], index: 0, kind: input, shape index: {}]
  %s1 = inlined_call_operand.vmem [shape: f32[1,32], index: 1, kind: input, shape index: {}]
  %s2 = inlined_call_operand.vmem [shape: f32[1,32], index: 2, kind: input, shape index: {}]
  %s3 = inlined_call_operand.vmem [shape: bf16[32,32], index: 3, kind: input, shape index: {}]
  %s4 = inlined_call_operand.vmem [shape: bf16[16,32], index: 4, kind: output, shape index: {}]
  %s5 = sld [smem:[#allocation0]]
  $region26: #{_lambda_.12} parent=0
    _
  %s7 = ssub.s32 1, %s5
  %s8 = scalar_select 0, %s7, %s5
  // Predicated region
  $region2: #{_lambda_.12} parent=0 // pred_check
    _
  $region3: #{_lambda_.12} parent=0 // pred_check_branch
    %10 = sbr.rel (0) target = $region5
  $region4: #{_lambda_.12} parent=0 // pred_region
    _
  $region5: #{_lambda_.12} parent=0 // pred_fallthru
    _
  // Predicated region
  $region6: #{_lambda_.12} parent=0 // pred_check
    _
  $region7: #{_lambda_.12} parent=0 // pred_check_branch
    %12 = sbr.rel (0) target = $region9
  $region8: #{_lambda_.12} parent=0 // pred_region
    _
  $region9: #{_lambda_.12} parent=0 // pred_fallthru
    _
  // Predicated region
  $region10: #{_lambda_.12} parent=0 // pred_check
    _
  $region11: #{_lambda_.12} parent=0 // pred_check_branch
    %14 = sbr.rel (0) target = $region13
  $region12: #{_lambda_.12} parent=0 // pred_region
    _
  $region13: #{_lambda_.12} parent=0 // pred_fallthru
    _
  // Predicated region
  $region14: #{_lambda_.12} parent=0 // pred_check
    _
  $region15: #{_lambda_.12} parent=0 // pred_check_branch
    %16 = sbr.rel (0) target = $region17
  $region16: #{_lambda_.12} parent=0 // pred_region
    _
  $region17: #{_lambda_.12} parent=0 // pred_fallthru
    _
  %v18 = vld [vmem:[%s0] sm:$0xff]
  %v19 = vld [vmem:[%s0 + $0x8] sm:$0xff]
  %vm20 = vcmask 261120
  %v21 = vsel %vm20, %v18, 0.0
  %22 = vadd.xlane.f32.xlu0 %v21
  %v23 = vpop.xlane.xlu0 %22
  %v24 = vsel %vm20, %v19, 0.0
  %25 = vadd.xlane.f32.xlu0 %v24
  %v26 = vpop.xlane.xlu0 %25
  %v27 = vrcp.pop 32.0
  %v28 = vmul.f32 32.0, %v27
  %v29 = vsub.f32 1.0, %v28
  %v30 = vmul.f32 %v27, %v29
  %v31 = vadd.f32 %v27, %v30
  %vm32 = vweird.f32 %v27
  %v33 = vsel %vm32, %v27, %v31
  %v34 = vmul.f32 %v23, %v33
  %v35 = vmul.f32 %v26, %v33
  %v36 = vsub.f32 %v18, %v34
  %v37 = vsub.f32 %v19, %v35
  %v38 = vmul.f32 %v36, %v36
  %v39 = vmul.f32 %v37, %v37
  %v40 = vsel %vm20, %v38, 0.0
  %41 = vadd.xlane.f32.xlu0 %v40
  %v42 = vpop.xlane.xlu0 %41
  %v43 = vsel %vm20, %v39, 0.0
  %44 = vadd.xlane.f32.xlu0 %v43
  %v45 = vpop.xlane.xlu0 %44
  %v46 = vmul.f32 %v42, %v33
  %v47 = vmul.f32 %v45, %v33
  %v48 = vadd.f32 %v46, 1e-05
  %v49 = vadd.f32 %v47, 1e-05
  %v50 = vrsqrt.pop %v48
  %v51 = vmul.f32 %v50, %v48
  %v52 = vmul.f32 %v51, %v50
  %v53 = vmul.f32 0.5, %v52
  %v54 = vsub.f32 1.5, %v53
  %v55 = vmul.f32 %v50, %v54
  %vm56 = vweird.f32 %v48
  %vm57 = vweird.f32 %v50
  %vm58 = vmor %vm56, %vm57
  %v59 = vsel %vm58, %v50, %v55
  %v60 = vrsqrt.pop %v49
  %v61 = vmul.f32 %v60, %v49
  %v62 = vmul.f32 %v61, %v60
  %v63 = vmul.f32 0.5, %v62
  %v64 = vsub.f32 1.5, %v63
  %v65 = vmul.f32 %v60, %v64
  %vm66 = vweird.f32 %v49
  %vm67 = vweird.f32 %v60
  %vm68 = vmor %vm66, %vm67
  %v69 = vsel %vm68, %v60, %v65
  %v70 = vmul.f32 %v36, %v59
  %v71 = vmul.f32 %v37, %v69
  %v72 = vld [vmem:[%s1] sm:$0x1]
  %v74 = vperm.slane %v72, 0
  %v76 = vmul.f32 %v70, %v74
  %v77 = vmul.f32 %v71, %v74
  %v78 = vld [vmem:[%s2] sm:$0x1]
  %v80 = vperm.slane %v78, 0
  %v82 = vadd.f32 %v76, %v80
  %v83 = vadd.f32 %v77, %v80
  %v84 = vpack.c.bf16 %v83, %v82
  %v85 = vld [vmem:[%s3] sm:$0xf]
  %v86 = vld [vmem:[%s3 + $0x4] sm:$0xf]
  %v87 = vld [vmem:[%s3 + $0x8] sm:$0xf]
  %v88 = vld [vmem:[%s3 + $0xc] sm:$0xf]
  %v93 = vunpack.c.l.b16 %v85
  %v94 = vunpack.c.l.b16 %v86
  %v95 = vunpack.c.l.b16 %v87
  %v96 = vunpack.c.l.b16 %v88
  %v97 = vpack.c.b16 %v94, %v93
  %v98 = vpack.c.b16 %v96, %v95
  %v102 = vsel %vm20, %v84, 0
  %104 = vmatpush.bf16.msra.mxu0 0
  %105 = vmatpush.bf16.msra.mxu0 0
  %106 = vmatpush.bf16.msra.mxu0 0
  %107 = vmatpush.bf16.msra.mxu0 0
  %108 = vmatpush.bf16.msra.mxu0 0
  %109 = vmatpush.bf16.msra.mxu0 0
  %110 = vmatpush.bf16.msra.mxu0 %v98
  %111 = vmatpush.bf16.msra.mxu0 %v97
  %112 = vmatmul.bf16.gmra.mxu0 %v102
  %v113 = vpop.f32.mrf.mxu0
  %v114 = vadd.f32 0.0, %v113
  %v115 = vpop.f32.mrf.mxu0
  %v116 = vadd.f32 0.0, %v115
  %117 = vdwg.mxu0
  %v118 = vpack.c.bf16 %v114, %v114
  %v119 = vpack.c.bf16 %v116, %v116
  %vm120 = vcmask 257024
  %121 = vst.msk [vmem:[%s4] sm:$0xf] %vm120, %v118
  %122 = vst.msk [vmem:[%s4 + $0x4] sm:$0xf] %vm120, %v119
  // Predicated region
  $region18: #{_lambda_.12} parent=0 // pred_check
    _
  $region19: #{_lambda_.12} parent=0 // pred_check_branch
    %124 = sbr.rel (0) target = $region21
  $region20: #{_lambda_.12} parent=0 // pred_region
    _
  $region21: #{_lambda_.12} parent=0 // pred_fallthru
    _
  // Predicated region
  $region22: #{_lambda_.12} parent=0 // pred_check
    _
  $region23: #{_lambda_.12} parent=0 // pred_check_branch
    %126 = sbr.rel (0) target = $region25
  $region24: #{_lambda_.12} parent=0 // pred_region
    _
  $region25: #{_lambda_.12} parent=0 // pred_fallthru
    _

// kernel: _lambda_.13
$region0: #{_lambda_.13}
  #allocation0 [shape = 'u32[]', space=smem, size = 0x4, offset = 0x4, fixed_abs, tag = 'smem constant byte address 0x4 - core index']
  #allocation1 [shape = 'u32[72,128]{1,0:T(1,128)}', space=vmem, size = 0x9000, scoped, tag = 'internal scratch']
  %s0 = inlined_call_operand.vmem [shape: f32[16,16], index: 0, kind: input, shape index: {}]
  %s1 = inlined_call_operand.vmem [shape: bf16[16,32], index: 1, kind: input, shape index: {}]
  %s2 = inlined_call_operand.vmem [shape: bf16[16,32], index: 2, kind: input, shape index: {}]
  %s3 = inlined_call_operand.vmem [shape: bf16[16,32], index: 3, kind: output, shape index: {0}]
  %s4 = inlined_call_operand.vmem [shape: bf16[16,32], index: 4, kind: output, shape index: {1}]
  %5 = xla_tuple %s3, %s4
  %s6 = sld [smem:[#allocation0]]
  $region30: #{_lambda_.13} parent=0
    _
  %s8 = ssub.s32 1, %s6
  %s9 = scalar_select 0, %s8, %s6
  // Predicated region
  $region2: #{_lambda_.13} parent=0 // pred_check
    _
  $region3: #{_lambda_.13} parent=0 // pred_check_branch
    %11 = sbr.rel (0) target = $region5
  $region4: #{_lambda_.13} parent=0 // pred_region
    _
  $region5: #{_lambda_.13} parent=0 // pred_fallthru
    _
  // Predicated region
  $region6: #{_lambda_.13} parent=0 // pred_check
    _
  $region7: #{_lambda_.13} parent=0 // pred_check_branch
    %13 = sbr.rel (0) target = $region9
  $region8: #{_lambda_.13} parent=0 // pred_region
    _
  $region9: #{_lambda_.13} parent=0 // pred_fallthru
    _
  // Predicated region
  $region10: #{_lambda_.13} parent=0 // pred_check
    _
  $region11: #{_lambda_.13} parent=0 // pred_check_branch
    %15 = sbr.rel (0) target = $region13
  $region12: #{_lambda_.13} parent=0 // pred_region
    _
  $region13: #{_lambda_.13} parent=0 // pred_fallthru
    _
  %v17 = vld [vmem:[%s0] sm:$0xff]
  %v18 = vld [vmem:[%s0 + $0x8] sm:$0xff]
  %v19 = vpack.c.bf16 %v18, %v17
  %v20 = vld [vmem:[%s1] sm:$0xf]
  %v21 = vld [vmem:[%s1 + $0x4] sm:$0xf]
  %v24 = vunpack.c.l.b16 %v20
  %v25 = vunpack.c.l.b16 %v21
  %v26 = vpack.c.b16 %v25, %v24
  %vm28 = vcmask 130048
  %v30 = vsel %vm28, %v19, 0
  %32 = vmatpush.bf16.msra.mxu0 0
  %33 = vmatpush.bf16.msra.mxu0 0
  %34 = vmatpush.bf16.msra.mxu0 0
  %35 = vmatpush.bf16.msra.mxu0 0
  %36 = vmatpush.bf16.msra.mxu0 0
  %37 = vmatpush.bf16.msra.mxu0 0
  %38 = vmatpush.bf16.msra.mxu0 0
  %39 = vmatpush.bf16.msra.mxu0 %v26
  %40 = vmatmul.bf16.gmra.mxu0 %v30
  %v41 = vpop.f32.mrf.mxu0
  %v42 = vadd.f32 0.0, %v41
  %v43 = vpop.f32.mrf.mxu0
  %v44 = vadd.f32 0.0, %v43
  %45 = vdwg.mxu0
  %v46 = vpack.c.bf16 %v42, %v42
  %v47 = vpack.c.bf16 %v44, %v44
  %vm48 = vcmask 257024
  %49 = vst.msk [vmem:[%s3] sm:$0xf] %vm48, %v46
  %50 = vst.msk [vmem:[%s3 + $0x4] sm:$0xf] %vm48, %v47
  %v51 = vld [vmem:[%s2] sm:$0xf]
  %v52 = vld [vmem:[%s2 + $0x4] sm:$0xf]
  %v55 = vunpack.c.l.b16 %v51
  %v56 = vunpack.c.l.b16 %v52
  %v57 = vpack.c.b16 %v56, %v55
  %59 = vmatpush.bf16.msra.mxu0 0
  %60 = vmatpush.bf16.msra.mxu0 0
  %61 = vmatpush.bf16.msra.mxu0 0
  %62 = vmatpush.bf16.msra.mxu0 0
  %63 = vmatpush.bf16.msra.mxu0 0
  %64 = vmatpush.bf16.msra.mxu0 0
  %65 = vmatpush.bf16.msra.mxu0 0
  %66 = vmatpush.bf16.msra.mxu0 %v57
  %67 = vmatmul.bf16.gmra.mxu0 %v30
  %v68 = vpop.f32.mrf.mxu0
  %v69 = vadd.f32 0.0, %v68
  %v70 = vpop.f32.mrf.mxu0
  %v71 = vadd.f32 0.0, %v70
  %72 = vdwg.mxu0
  %v73 = vpack.c.bf16 %v69, %v69
  %v74 = vpack.c.bf16 %v71, %v71
  %75 = vst.msk [vmem:[%s4] sm:$0xf] %vm48, %v73
  %76 = vst.msk [vmem:[%s4 + $0x4] sm:$0xf] %vm48, %v74
  // Predicated region
  $region14: #{_lambda_.13} parent=0 // pred_check
    _
  $region15: #{_lambda_.13} parent=0 // pred_check_branch
    %78 = sbr.rel (0) target = $region17
  $region16: #{_lambda_.13} parent=0 // pred_region
    _
  $region17: #{_lambda_.13} parent=0 // pred_fallthru
    _
  // Predicated region
  $region18: #{_lambda_.13} parent=0 // pred_check
    _
  $region19: #{_lambda_.13} parent=0 // pred_check_branch
    %80 = sbr.rel (0) target = $region21
  $region20: #{_lambda_.13} parent=0 // pred_region
    _
  $region21: #{_lambda_.13} parent=0 // pred_fallthru
    _
  // Predicated region
  $region22: #{_lambda_.13} parent=0 // pred_check
    _
  $region23: #{_lambda_.13} parent=0 // pred_check_branch
    %82 = sbr.rel (0) target = $region25
  $region24: #{_lambda_.13} parent=0 // pred_region
    _
  $region25: #{_lambda_.13} parent=0 // pred_fallthru
    _
  // Predicated region
  $region26: #{_lambda_.13} parent=0 // pred_check
    _
  $region27: #{_lambda_.13} parent=0 // pred_check_branch
    %84 = sbr.rel (0) target = $region29
  $region28: #{_lambda_.13} parent=0 // pred_region
    _
  $region29: #{_lambda_.13} parent=0 // pred_fallthru
    _

// kernel: _lambda_.16
$region0: #{_lambda_.16}
  #allocation0 [shape = 'u32[]', space=smem, size = 0x4, offset = 0x4, fixed_abs, tag = 'smem constant byte address 0x4 - core index']
  #allocation1 [shape = 'u32[72,128]{1,0:T(1,128)}', space=vmem, size = 0x9000, scoped, tag = 'internal scratch']
  %s0 = inlined_call_operand.vmem [shape: f32[16,32], index: 0, kind: input, shape index: {}]
  %s1 = inlined_call_operand.vmem [shape: f32[1,32], index: 1, kind: input, shape index: {}]
  %s2 = inlined_call_operand.vmem [shape: f32[1,32], index: 2, kind: input, shape index: {}]
  %s3 = inlined_call_operand.vmem [shape: bf16[32,128], index: 3, kind: input, shape index: {}]
  %s4 = inlined_call_operand.vmem [shape: bf16[32,128], index: 4, kind: input, shape index: {}]
  %s5 = inlined_call_operand.vmem [shape: f32[1,128], index: 5, kind: input, shape index: {}]
  %s6 = inlined_call_operand.vmem [shape: f32[1,128], index: 6, kind: input, shape index: {}]
  %s7 = inlined_call_operand.vmem [shape: bf16[16,128], index: 7, kind: output, shape index: {}]
  %s8 = sld [smem:[#allocation0]]
  $region38: #{_lambda_.16} parent=0
    _
  %s10 = ssub.s32 1, %s8
  %s11 = scalar_select 0, %s10, %s8
  // Predicated region
  $region2: #{_lambda_.16} parent=0 // pred_check
    _
  $region3: #{_lambda_.16} parent=0 // pred_check_branch
    %13 = sbr.rel (0) target = $region5
  $region4: #{_lambda_.16} parent=0 // pred_region
    _
  $region5: #{_lambda_.16} parent=0 // pred_fallthru
    _
  // Predicated region
  $region6: #{_lambda_.16} parent=0 // pred_check
    _
  $region7: #{_lambda_.16} parent=0 // pred_check_branch
    %15 = sbr.rel (0) target = $region9
  $region8: #{_lambda_.16} parent=0 // pred_region
    _
  $region9: #{_lambda_.16} parent=0 // pred_fallthru
    _
  // Predicated region
  $region10: #{_lambda_.16} parent=0 // pred_check
    _
  $region11: #{_lambda_.16} parent=0 // pred_check_branch
    %17 = sbr.rel (0) target = $region13
  $region12: #{_lambda_.16} parent=0 // pred_region
    _
  $region13: #{_lambda_.16} parent=0 // pred_fallthru
    _
  // Predicated region
  $region14: #{_lambda_.16} parent=0 // pred_check
    _
  $region15: #{_lambda_.16} parent=0 // pred_check_branch
    %19 = sbr.rel (0) target = $region17
  $region16: #{_lambda_.16} parent=0 // pred_region
    _
  $region17: #{_lambda_.16} parent=0 // pred_fallthru
    _
  // Predicated region
  $region18: #{_lambda_.16} parent=0 // pred_check
    _
  $region19: #{_lambda_.16} parent=0 // pred_check_branch
    %21 = sbr.rel (0) target = $region21
  $region20: #{_lambda_.16} parent=0 // pred_region
    _
  $region21: #{_lambda_.16} parent=0 // pred_fallthru
    _
  // Predicated region
  $region22: #{_lambda_.16} parent=0 // pred_check
    _
  $region23: #{_lambda_.16} parent=0 // pred_check_branch
    %23 = sbr.rel (0) target = $region25
  $region24: #{_lambda_.16} parent=0 // pred_region
    _
  $region25: #{_lambda_.16} parent=0 // pred_fallthru
    _
  // Predicated region
  $region26: #{_lambda_.16} parent=0 // pred_check
    _
  $region27: #{_lambda_.16} parent=0 // pred_check_branch
    %25 = sbr.rel (0) target = $region29
  $region28: #{_lambda_.16} parent=0 // pred_region
    _
  $region29: #{_lambda_.16} parent=0 // pred_fallthru
    _
  %v27 = vld [vmem:[%s0] sm:$0xff]
  %v28 = vld [vmem:[%s0 + $0x8] sm:$0xff]
  %vm29 = vcmask 261120
  %v30 = vsel %vm29, %v27, 0.0
  %31 = vadd.xlane.f32.xlu0 %v30
  %v32 = vpop.xlane.xlu0 %31
  %v33 = vsel %vm29, %v28, 0.0
  %34 = vadd.xlane.f32.xlu0 %v33
  %v35 = vpop.xlane.xlu0 %34
  %v36 = vrcp.pop 32.0
  %v37 = vmul.f32 32.0, %v36
  %v38 = vsub.f32 1.0, %v37
  %v39 = vmul.f32 %v36, %v38
  %v40 = vadd.f32 %v36, %v39
  %vm41 = vweird.f32 %v36
  %v42 = vsel %vm41, %v36, %v40
  %v43 = vmul.f32 %v32, %v42
  %v44 = vmul.f32 %v35, %v42
  %v45 = vsub.f32 %v27, %v43
  %v46 = vsub.f32 %v28, %v44
  %v47 = vmul.f32 %v45, %v45
  %v48 = vmul.f32 %v46, %v46
  %v49 = vsel %vm29, %v47, 0.0
  %50 = vadd.xlane.f32.xlu0 %v49
  %v51 = vpop.xlane.xlu0 %50
  %v52 = vsel %vm29, %v48, 0.0
  %53 = vadd.xlane.f32.xlu0 %v52
  %v54 = vpop.xlane.xlu0 %53
  %v55 = vmul.f32 %v51, %v42
  %v56 = vmul.f32 %v54, %v42
  %v57 = vadd.f32 %v55, 1e-05
  %v58 = vadd.f32 %v56, 1e-05
  %v59 = vrsqrt.pop %v57
  %v60 = vmul.f32 %v59, %v57
  %v61 = vmul.f32 %v60, %v59
  %v62 = vmul.f32 0.5, %v61
  %v63 = vsub.f32 1.5, %v62
  %v64 = vmul.f32 %v59, %v63
  %vm65 = vweird.f32 %v57
  %vm66 = vweird.f32 %v59
  %vm67 = vmor %vm65, %vm66
  %v68 = vsel %vm67, %v59, %v64
  %v69 = vrsqrt.pop %v58
  %v70 = vmul.f32 %v69, %v58
  %v71 = vmul.f32 %v70, %v69
  %v72 = vmul.f32 0.5, %v71
  %v73 = vsub.f32 1.5, %v72
  %v74 = vmul.f32 %v69, %v73
  %vm75 = vweird.f32 %v58
  %vm76 = vweird.f32 %v69
  %vm77 = vmor %vm75, %vm76
  %v78 = vsel %vm77, %v69, %v74
  %v79 = vmul.f32 %v45, %v68
  %v80 = vmul.f32 %v46, %v78
  %v81 = vld [vmem:[%s1] sm:$0x1]
  %v83 = vperm.slane %v81, 0
  %v85 = vmul.f32 %v79, %v83
  %v86 = vmul.f32 %v80, %v83
  %v87 = vld [vmem:[%s2] sm:$0x1]
  %v89 = vperm.slane %v87, 0
  %v91 = vadd.f32 %v85, %v89
  %v92 = vadd.f32 %v86, %v89
  %v93 = vpack.c.bf16 %v92, %v91
  %v94 = vld [vmem:[%s3] sm:$0xf]
  %v95 = vld [vmem:[%s3 + $0x4] sm:$0xf]
  %v96 = vld [vmem:[%s3 + $0x8] sm:$0xf]
  %v97 = vld [vmem:[%s3 + $0xc] sm:$0xf]
  %v98 = vld [vmem:[%s5] sm:$0x1]
  %v100 = vperm.slane %v98, 0
  %v106 = vunpack.c.l.b16 %v94
  %v107 = vunpack.c.l.b16 %v95
  %v108 = vunpack.c.l.b16 %v96
  %v109 = vunpack.c.l.b16 %v97
  %v110 = vpack.c.b16 %v107, %v106
  %v111 = vpack.c.b16 %v109, %v108
  %v115 = vsel %vm29, %v93, 0
  %117 = vmatpush.bf16.msra.mxu0 0
  %118 = vmatpush.bf16.msra.mxu0 0
  %119 = vmatpush.bf16.msra.mxu0 0
  %120 = vmatpush.bf16.msra.mxu0 0
  %121 = vmatpush.bf16.msra.mxu0 0
  %122 = vmatpush.bf16.msra.mxu0 0
  %123 = vmatpush.bf16.msra.mxu0 %v111
  %124 = vmatpush.bf16.msra.mxu0 %v110
  %125 = vmatmul.bf16.gmra.mxu0 %v115
  %v126 = vpop.f32.mrf.mxu0
  %v127 = vadd.f32 %v100, %v126
  %v128 = vpop.f32.mrf.mxu0
  %v129 = vadd.f32 %v100, %v128
  %130 = vdwg.mxu0
  %v131 = vld [vmem:[%s4] sm:$0xf]
  %v132 = vld [vmem:[%s4 + $0x4] sm:$0xf]
  %v133 = vld [vmem:[%s4 + $0x8] sm:$0xf]
  %v134 = vld [vmem:[%s4 + $0xc] sm:$0xf]
  %v135 = vld [vmem:[%s6] sm:$0x1]
  %v137 = vperm.slane %v135, 0
  %v143 = vunpack.c.l.b16 %v131
  %v144 = vunpack.c.l.b16 %v132
  %v145 = vunpack.c.l.b16 %v133
  %v146 = vunpack.c.l.b16 %v134
  %v147 = vpack.c.b16 %v144, %v143
  %v148 = vpack.c.b16 %v146, %v145
  %151 = vmatpush.bf16.msra.mxu0 0
  %152 = vmatpush.bf16.msra.mxu0 0
  %153 = vmatpush.bf16.msra.mxu0 0
  %154 = vmatpush.bf16.msra.mxu0 0
  %155 = vmatpush.bf16.msra.mxu0 0
  %156 = vmatpush.bf16.msra.mxu0 0
  %157 = vmatpush.bf16.msra.mxu0 %v148
  %158 = vmatpush.bf16.msra.mxu0 %v147
  %159 = vmatmul.bf16.gmra.mxu0 %v115
  %v160 = vpop.f32.mrf.mxu0
  %v161 = vadd.f32 %v137, %v160
  %v162 = vpop.f32.mrf.mxu0
  %v163 = vadd.f32 %v137, %v162
  %164 = vdwg.mxu0
  %v165 = vmul.f32 %v161, 0.5
  %v166 = vmul.f32 %v163, 0.5
  %v167 = vmul.f32 %v161, 0.70710677
  %v168 = vmul.f32 %v163, 0.70710677
  %v169 = vmul.f32 %v167, %v167
  %v170 = vmin.f32 16.0, %v169
  %v171 = vmul.f32 %v170, 2.1237322e-06
  %v172 = vadd.f32 %v171, 0.00028619796
  %v173 = vmul.f32 %v170, %v172
  %v174 = vadd.f32 %v173, 0.0036580483
  %v175 = vmul.f32 %v170, %v174
  %v176 = vadd.f32 %v175, 0.05243302
  %v177 = vmul.f32 %v170, %v176
  %v178 = vadd.f32 %v177, 0.18741608
  %v179 = vmul.f32 %v170, %v178
  %v180 = vadd.f32 %v179, 1.1283791
  %v181 = vmul.f32 %v167, %v180
  %v182 = vmul.f32 %v170, 3.8918573e-05
  %v183 = vadd.f32 %v182, 0.001143296
  %v184 = vmul.f32 %v170, %v183
  %v185 = vadd.f32 %v184, 0.014752088
  %v186 = vmul.f32 %v170, %v185
  %v187 = vadd.f32 %v186, 0.112945676
  %v188 = vmul.f32 %v170, %v187
  %v189 = vadd.f32 %v188, 0.4994258
  %v190 = vmul.f32 %v170, %v189
  %v191 = vadd.f32 %v190, 1.0
  %v192 = vrcp.pop %v191
  %v193 = vmul.f32 %v191, %v192
  %v194 = vsub.f32 1.0, %v193
  %v195 = vmul.f32 %v192, %v194
  %v196 = vadd.f32 %v192, %v195
  %vm197 = vweird.f32 %v191
  %vm198 = vweird.f32 %v192
  %vm199 = vmor %vm197, %vm198
  %v200 = vsel %vm199, %v192, %v196
  %v201 = vand.u32 2147483647, %v191
  %vm202 = vcmp.eq.f32.partialorder %v201, 8.507059e+37
  %v203 = vand.u32 %v191, 2147483648
  %v204 = vor.u32 1.1754944e-38, %v203
  %v205 = vsel %vm202, %v204, %v200
  %v206 = vmul.f32 %v181, %v205
  %v207 = vmin.f32 %v206, 1.0
  %v208 = vmax.f32 %v207, -1.0
  %v209 = vmul.f32 %v168, %v168
  %v210 = vmin.f32 16.0, %v209
  %v211 = vmul.f32 %v210, 2.1237322e-06
  %v212 = vadd.f32 %v211, 0.00028619796
  %v213 = vmul.f32 %v210, %v212
  %v214 = vadd.f32 %v213, 0.0036580483
  %v215 = vmul.f32 %v210, %v214
  %v216 = vadd.f32 %v215, 0.05243302
  %v217 = vmul.f32 %v210, %v216
  %v218 = vadd.f32 %v217, 0.18741608
  %v219 = vmul.f32 %v210, %v218
  %v220 = vadd.f32 %v219, 1.1283791
  %v221 = vmul.f32 %v168, %v220
  %v222 = vmul.f32 %v210, 3.8918573e-05
  %v223 = vadd.f32 %v222, 0.001143296
  %v224 = vmul.f32 %v210, %v223
  %v225 = vadd.f32 %v224, 0.014752088
  %v226 = vmul.f32 %v210, %v225
  %v227 = vadd.f32 %v226, 0.112945676
  %v228 = vmul.f32 %v210, %v227
  %v229 = vadd.f32 %v228, 0.4994258
  %v230 = vmul.f32 %v210, %v229
  %v231 = vadd.f32 %v230, 1.0
  %v232 = vrcp.pop %v231
  %v233 = vmul.f32 %v231, %v232
  %v234 = vsub.f32 1.0, %v233
  %v235 = vmul.f32 %v232, %v234
  %v236 = vadd.f32 %v232, %v235
  %vm237 = vweird.f32 %v231
  %vm238 = vweird.f32 %v232
  %vm239 = vmor %vm237, %vm238
  %v240 = vsel %vm239, %v232, %v236
  %v241 = vand.u32 2147483647, %v231
  %vm242 = vcmp.eq.f32.partialorder %v241, 8.507059e+37
  %v243 = vand.u32 %v231, 2147483648
  %v244 = vor.u32 1.1754944e-38, %v243
  %v245 = vsel %vm242, %v244, %v240
  %v246 = vmul.f32 %v221, %v245
  %v247 = vmin.f32 %v246, 1.0
  %v248 = vmax.f32 %v247, -1.0
  %v249 = vadd.f32 %v208, 1.0
  %v250 = vadd.f32 %v248, 1.0
  %v251 = vmul.f32 %v165, %v249
  %v252 = vmul.f32 %v166, %v250
  %v253 = vmul.f32 %v127, %v251
  %v254 = vmul.f32 %v129, %v252
  %v255 = vpack.c.bf16 %v253, %v253
  %v256 = vpack.c.bf16 %v254, %v254
  %257 = vst [vmem:[%s7] sm:$0xf] %v255
  %258 = vst [vmem:[%s7 + $0x4] sm:$0xf] %v256
  // Predicated region
  $region30: #{_lambda_.16} parent=0 // pred_check
    _
  $region31: #{_lambda_.16} parent=0 // pred_check_branch
    %260 = sbr.rel (0) target = $region33
  $region32: #{_lambda_.16} parent=0 // pred_region
    _
  $region33: #{_lambda_.16} parent=0 // pred_fallthru
    _
  // Predicated region
  $region34: #{_lambda_.16} parent=0 // pred_check
    _
  $region35: #{_lambda_.16} parent=0 // pred_check_branch
    %262 = sbr.rel (0) target = $region37
  $region36: #{_lambda_.16} parent=0 // pred_region
    _
  $region37: #{_lambda_.16} parent=0 // pred_fallthru
    _

// kernel: _lambda_.17
$region0: #{_lambda_.17}
  #allocation0 [shape = 'u32[]', space=smem, size = 0x4, offset = 0x4, fixed_abs, tag = 'smem constant byte address 0x4 - core index']
  #allocation1 [shape = 'u32[72,128]{1,0:T(1,128)}', space=vmem, size = 0x9000, scoped, tag = 'internal scratch']
  %s0 = inlined_call_operand.vmem [shape: bf16[16,128], index: 0, kind: input, shape index: {}]
  %s1 = inlined_call_operand.vmem [shape: bf16[128,32], index: 1, kind: input, shape index: {}]
  %s2 = inlined_call_operand.vmem [shape: f32[1,32], index: 2, kind: input, shape index: {}]
  %s3 = inlined_call_operand.vmem [shape: f32[16,32], index: 3, kind: input, shape index: {}]
  %s4 = inlined_call_operand.hbm [shape: f32[16,32], index: 4, kind: output, shape index: {}]
  %s5 = sld [smem:[#allocation0]]
  $region26: #{_lambda_.17} parent=0
    _
  %s7 = ssub.s32 1, %s5
  %s8 = scalar_select 0, %s7, %s5
  $region1: #{_lambda_.17} parent=0
    #allocation2 [shape = 'u8[8192]{0}', space=vmem, size = 0x2000, scoped, tag = 'output window, operand 0, single buffered']
    #allocation3 [shape = 's32[1]{0}', space=sflag, size = 0x4, scoped, tag = 'scoped memory for _lambda_.17']
    %9 = vsyncpa [#allocation3], 0
    // Predicated region
    $region2: #{_lambda_.17} parent=1 // pred_check
      _
    $region3: #{_lambda_.17} parent=1 // pred_check_branch
      %11 = sbr.rel (0) target = $region5
    $region4: #{_lambda_.17} parent=1 // pred_region
      _
    $region5: #{_lambda_.17} parent=1 // pred_fallthru
      _
    // Predicated region
    $region6: #{_lambda_.17} parent=1 // pred_check
      _
    $region7: #{_lambda_.17} parent=1 // pred_check_branch
      %13 = sbr.rel (0) target = $region9
    $region8: #{_lambda_.17} parent=1 // pred_region
      _
    $region9: #{_lambda_.17} parent=1 // pred_fallthru
      _
    // Predicated region
    $region10: #{_lambda_.17} parent=1 // pred_check
      _
    $region11: #{_lambda_.17} parent=1 // pred_check_branch
      %15 = sbr.rel (0) target = $region13
    $region12: #{_lambda_.17} parent=1 // pred_region
      _
    $region13: #{_lambda_.17} parent=1 // pred_fallthru
      _
    // Predicated region
    $region14: #{_lambda_.17} parent=1 // pred_check
      _
    $region15: #{_lambda_.17} parent=1 // pred_check_branch
      %17 = sbr.rel (0) target = $region17
    $region16: #{_lambda_.17} parent=1 // pred_region
      _
    $region17: #{_lambda_.17} parent=1 // pred_fallthru
      _
    %v18 = vld [vmem:[%s0] sm:$0xf]
    %v19 = vld [vmem:[%s0 + $0x4] sm:$0xf]
    %v20 = vld [vmem:[%s1] sm:$0xf]
    %v21 = vld [vmem:[%s1 + $0x4] sm:$0xf]
    %v22 = vld [vmem:[%s1 + $0x8] sm:$0xf]
    %v23 = vld [vmem:[%s1 + $0xc] sm:$0xf]
    %v24 = vld [vmem:[%s1 + $0x10] sm:$0xf]
    %v25 = vld [vmem:[%s1 + $0x14] sm:$0xf]
    %v26 = vld [vmem:[%s1 + $0x18] sm:$0xf]
    %v27 = vld [vmem:[%s1 + $0x1c] sm:$0xf]
    %v28 = vld [vmem:[%s1 + $0x20] sm:$0xf]
    %v29 = vld [vmem:[%s1 + $0x24] sm:$0xf]
    %v30 = vld [vmem:[%s1 + $0x28] sm:$0xf]
    %v31 = vld [vmem:[%s1 + $0x2c] sm:$0xf]
    %v32 = vld [vmem:[%s1 + $0x30] sm:$0xf]
    %v33 = vld [vmem:[%s1 + $0x34] sm:$0xf]
    %v34 = vld [vmem:[%s1 + $0x38] sm:$0xf]
    %v35 = vld [vmem:[%s1 + $0x3c] sm:$0xf]
    %v36 = vld [vmem:[%s2] sm:$0x1]
    %v38 = vperm.slane %v36, 0
    %v42 = vunpack.c.l.b16 %v18
    %v43 = vunpack.c.l.b16 %v19
    %v44 = vpack.c.b16 %v43, %v42
    %v62 = vunpack.c.l.b16 %v20
    %v63 = vunpack.c.l.b16 %v21
    %v64 = vunpack.c.l.b16 %v22
    %v65 = vunpack.c.l.b16 %v23
    %v66 = vunpack.c.l.b16 %v24
    %v67 = vunpack.c.l.b16 %v25
    %v68 = vunpack.c.l.b16 %v26
    %v69 = vunpack.c.l.b16 %v27
    %v70 = vunpack.c.l.b16 %v28
    %v71 = vunpack.c.l.b16 %v29
    %v72 = vunpack.c.l.b16 %v30
    %v73 = vunpack.c.l.b16 %v31
    %v74 = vunpack.c.l.b16 %v32
    %v75 = vunpack.c.l.b16 %v33
    %v76 = vunpack.c.l.b16 %v34
    %v77 = vunpack.c.l.b16 %v35
    %v78 = vpack.c.b16 %v63, %v62
    %v79 = vpack.c.b16 %v65, %v64
    %v80 = vpack.c.b16 %v67, %v66
    %v81 = vpack.c.b16 %v69, %v68
    %v82 = vpack.c.b16 %v71, %v70
    %v83 = vpack.c.b16 %v73, %v72
    %v84 = vpack.c.b16 %v75, %v74
    %v85 = vpack.c.b16 %v77, %v76
    %94 = vmatpush.bf16.msra.mxu0 %v85
    %95 = vmatpush.bf16.msra.mxu0 %v84
    %96 = vmatpush.bf16.msra.mxu0 %v83
    %97 = vmatpush.bf16.msra.mxu0 %v82
    %98 = vmatpush.bf16.msra.mxu0 %v81
    %99 = vmatpush.bf16.msra.mxu0 %v80
    %100 = vmatpush.bf16.msra.mxu0 %v79
    %101 = vmatpush.bf16.msra.mxu0 %v78
    %102 = vmatmul.bf16.gmra.mxu0 %v44
    %v103 = vpop.f32.mrf.mxu0
    %v104 = vadd.f32 %v38, %v103
    %v105 = vpop.f32.mrf.mxu0
    %v106 = vadd.f32 %v38, %v105
    %107 = vdwg.mxu0
    %v108 = vld [vmem:[%s3] sm:$0xff]
    %v109 = vld [vmem:[%s3 + $0x8] sm:$0xff]
    %v110 = vadd.f32 %v104, %v108
    %v111 = vadd.f32 %v106, %v109
    %vm112 = vcmask 261120
    %113 = vst.msk [vmem:[#allocation2] sm:$0xff] %vm112, %v110
    %114 = vst.msk [vmem:[#allocation2 + $0x8] sm:$0xff] %vm112, %v111
    // Predicated region
    $region18: #{_lambda_.17} parent=1 // pred_check
      _
    $region19: #{_lambda_.17} parent=1 // pred_check_branch
      %116 = sbr.rel (0) target = $region21
    $region20: #{_lambda_.17} parent=1 // pred_region
      %118 = vsyncadd [#allocation3], 0
      %s119 = sshll.u32 [#allocation2], 4
      %s120 = int_to_ptr.vmem [resolvable:$true] %s119
      %s121 = sshll.u32 %s4, 4
      %s122 = int_to_ptr.hbm [resolvable:$true] %s121
      %127 = dma.vmem_to_hbm [thread:$0]  %s120, 256, %s122, [#allocation3], 128, 128, 8
    $region21: #{_lambda_.17} parent=1 // pred_fallthru
      _
    // Predicated region
    $region22: #{_lambda_.17} parent=1 // pred_check
      _
    $region23: #{_lambda_.17} parent=1 // pred_check_branch
      %129 = sbr.rel (0) target = $region25
    $region24: #{_lambda_.17} parent=1 // pred_region
      %131 = dma.done [#allocation3], 256
    $region25: #{_lambda_.17} parent=1 // pred_fallthru
      _
    %132 = vsyncpa [#allocation3], 1

</llo_original>
